<compile_context>
chip_gen: v7x
topology: tpu7x:2x2x1
jax: 0.10.0
libtpu: 0.0.40
codegen_flags: <defaults>
</compile_context>

<pallas_src>
import math

import jax
import jax.numpy as jnp
from jax import lax
from jax.experimental import pallas as pl
from jax.experimental.pallas import tpu as pltpu


# Row 0 of the im2col slab is the constant "ones" row (bias fold); taps start
# at this sublane-group-aligned offset so 8-row tap stores are aligned.
_TAP_ROW0 = 8
_NSTAGE = 8
_TAPS3 = (-1, 0, 1)
_TAPS9 = (-4, -3, -2, -1, 0, 1, 2, 3, 4)


def _round_up(x, m):
    return ((x + m - 1) // m) * m


# ----------------------------------------------------------------------------
# Static description of the block (mirrors MsmsfBlock.__init__)
# ----------------------------------------------------------------------------
def _build_plan(in_channels, out_channels):
    d = out_channels // 4
    # (name, cin, cout, kx1, ky1, kx2, ky2)  -- TwoConv arguments
    return [
        ("conv1_1", in_channels, d, 1, 3, 3, 1),
        ("conv1_2", d, d, 1, 3, 3, 1),
        ("conv2_1", in_channels, d, 1, 3, 5, 1),
        ("conv2_2", d, d, 1, 5, 3, 1),
        ("conv3_1", in_channels, d, 1, 3, 7, 1),
        ("conv3_2", d, d, 1, 7, 3, 1),
        ("conv4_1", in_channels, d, 1, 3, 9, 1),
        ("conv4_2", d, d, 1, 9, 3, 1),
        ("fuse12", 2 * d, 2 * d, 1, 3, 3, 1),
        ("fuse34", 2 * d, 2 * d, 1, 3, 3, 1),
        ("fuse1234", 4 * d, 4 * d, 1, 3, 3, 1),
    ]


# ----------------------------------------------------------------------------
# Parameter construction (deterministic, nn.Conv2d-shaped weights in HWIO)
# ----------------------------------------------------------------------------
def init_twoconv(key, cin, cout, kx1, ky1, kx2, ky2):
    k1, k2, k3, k4 = jax.random.split(key, 4)
    s1 = 1.0 / math.sqrt(cin * kx1 * ky1)
    s2 = 1.0 / math.sqrt(cout * kx2 * ky2)
    return dict(
        w1=jax.random.uniform(k1, (kx1, ky1, cin, cout), jnp.float32, -s1, s1),
        b1=jax.random.uniform(k2, (cout,), jnp.float32, -s1, s1),
        w2=jax.random.uniform(k3, (kx2, ky2, cout, cout), jnp.float32, -s2, s2),
        b2=jax.random.uniform(k4, (cout,), jnp.float32, -s2, s2),
    )


def init_msmsf_params(key, in_channels, out_channels):
    plan = _build_plan(in_channels, out_channels)
    keys = jax.random.split(key, len(plan))
    return {
        name: init_twoconv(k, cin, cout, kx1, ky1, kx2, ky2)
        for k, (name, cin, cout, kx1, ky1, kx2, ky2) in zip(keys, plan)
    }


# ----------------------------------------------------------------------------
# Weight packing: all 22 convs -> ONE (8, C_out, KPAD) buffer, biases folded.
#
# The 22 convs collapse into 8 fused "stages"; each stage is a single MXU dot
#     y = W_s @ X          W_s : (C_out, KPAD),   X : (KPAD, H*W)
# where X is the shared im2col slab of the stage input (all branches stacked
# along channels) with contraction-row layout
#     row 0                       : ones            (bias column of W_s)
#     rows 1 .. _TAP_ROW0-1       : zero filler     (alignment)
#     row  _TAP_ROW0 + t*cin + c  : tap t, input channel c
#     remaining rows              : don't-care      (matching W_s columns are 0)
#
# Stage table (d = C_out // 4):
#   0  conv{1..4}_1.conv1  1x3 on the raw input    (shared im2col, one dot)
#   1  conv{1..4}_1.conv2  (3/5/7/9)x1             (block weights, 9 v-taps)
#   2  conv{1..4}_2.conv1  1x(3/5/7/9)             (block weights, 9 h-taps)
#   3  conv{1..4}_2.conv2  3x1
#   4  fuse12.conv1 | fuse34.conv1   1x3           (block-diagonal)
#   5  fuse12.conv2 | fuse34.conv2   3x1           (block-diagonal)
#   6  fuse1234.conv1      1x3
#   7  fuse1234.conv2      3x1  (+ final ReLU)
# ----------------------------------------------------------------------------
def _pack_weights(params, in_channels, out_channels):
    d = out_channels // 4
    D4 = out_channels
    C1 = in_channels
    KPAD = _round_up(_TAP_ROW0 + max(3 * C1, 9 * D4), 8)

    def stage_matrix(groups, cin_s, T, orient):
        """groups: list of (w_hwio, bias, in_chan_offset, out_chan_offset)."""
        wtap = jnp.zeros((T, cin_s, D4), jnp.float32)   # (tap, in_ch, out_ch)
        bias = jnp.zeros((D4,), jnp.float32)
        for w, b, in_off, out_off in groups:
            kh, kw, ci, co = w.shape
            if orient == "h":
                assert kh == 1
                k, wk = kw, w[0]          # (kw, ci, co); weight j <-> dj = j - kw//2
            else:
                assert kw == 1
                k, wk = kh, w[:, 0]       # (kh, ci, co); weight i <-> di = i - kh//2
            t0 = T // 2 - k // 2          # centre the k taps inside the T-tap slab
            wtap = wtap.at[t0:t0 + k, in_off:in_off + ci,
                           out_off:out_off + co].set(wk.astype(jnp.float32))
            bias = bias.at[out_off:out_off + co].set(b.astype(jnp.float32))
        mat = jnp.zeros((D4, KPAD), jnp.float32)
        mat = mat.at[:, 0].set(bias)                              # bias column
        mat = mat.at[:, _TAP_ROW0:_TAP_ROW0 + T * cin_s].set(
            wtap.reshape(T * cin_s, D4).T)                        # tap-major rows
        return mat

    b1 = ["conv1_1", "conv2_1", "conv3_1", "conv4_1"]
    b2 = ["conv1_2", "conv2_2", "conv3_2", "conv4_2"]
    p = params
    stages = [
        stage_matrix([(p[n]["w1"], p[n]["b1"], 0, i * d)
                      for i, n in enumerate(b1)], C1, 3, "h"),
        stage_matrix([(p[n]["w2"], p[n]["b2"], i * d, i * d)
                      for i, n in enumerate(b1)], D4, 9, "v"),
        stage_matrix([(p[n]["w1"], p[n]["b1"], i * d, i * d)
                      for i, n in enumerate(b2)], D4, 9, "h"),
        stage_matrix([(p[n]["w2"], p[n]["b2"], i * d, i * d)
                      for i, n in enumerate(b2)], D4, 3, "v"),
        stage_matrix([(p["fuse12"]["w1"], p["fuse12"]["b1"], 0, 0),
                      (p["fuse34"]["w1"], p["fuse34"]["b1"], 2 * d, 2 * d)],
                     D4, 3, "h"),
        stage_matrix([(p["fuse12"]["w2"], p["fuse12"]["b2"], 0, 0),
                      (p["fuse34"]["w2"], p["fuse34"]["b2"], 2 * d, 2 * d)],
                     D4, 3, "v"),
        stage_matrix([(p["fuse1234"]["w1"], p["fuse1234"]["b1"], 0, 0)],
                     D4, 3, "h"),
        stage_matrix([(p["fuse1234"]["w2"], p["fuse1234"]["b2"], 0, 0)],
                     D4, 3, "v"),
    ]
    return jnp.stack(stages, axis=0), KPAD


def _stage_meta(C1, D4):
    # (orientation, tap deltas, input channel count) per fused stage;
    # MUST stay in lockstep with _pack_weights' stage list.
    return (
        ("h", _TAPS3, C1),
        ("v", _TAPS9, D4),
        ("h", _TAPS9, D4),
        ("v", _TAPS3, D4),
        ("h", _TAPS3, D4),
        ("v", _TAPS3, D4),
        ("h", _TAPS3, D4),
        ("v", _TAPS3, D4),
    )


# ----------------------------------------------------------------------------
# Fused kernel body
# ----------------------------------------------------------------------------
def _make_kernel(C1, D4, H, W, KPAD):
    HW = H * W
    meta = _stage_meta(C1, D4)

    def kernel(x_ref, w_ref, o_ref, im_ref):
        # -- hoisted horizontal boundary masks: built ONCE from an in-kernel
        #    iota and reused by every stage (vertical shifts need no mask --
        #    the zero fill is already the "same" padding). --
        lane = lax.broadcasted_iota(jnp.int32, (1, HW), 1)
        col = lane & (W - 1) if (W & (W - 1)) == 0 else lane % W
        hmask = {}
        for dj in range(-4, 5):
            if dj == 0:
                continue
            c2 = col + dj
            hmask[dj] = ((c2 >= 0) & (c2 < W)).astype(jnp.float32)

        def hshift(x, dj):
            # y[:, h*W + w] = x[:, h*W + (w + dj)] inside the row, else 0.
            if dj == 0:
                return x
            c = x.shape[0]
            if dj > 0:
                y = jnp.concatenate(
                    [x[:, dj:], jnp.zeros((c, dj), x.dtype)], axis=1)
            else:
                y = jnp.concatenate(
                    [jnp.zeros((c, -dj), x.dtype), x[:, :HW + dj]], axis=1)
            # Keep this mask: the lane shift wraps pixels across row edges.
            return y * hmask[dj]

        def vshift(x, di):
            # y[:, h*W + w] = x[:, (h + di)*W + w]; zero fill == vertical pad.
            if di == 0:
                return x
            c = x.shape[0]
            s = di * W
            if s > 0:
                return jnp.concatenate(
                    [x[:, s:], jnp.zeros((c, s), x.dtype)], axis=1)
            return jnp.concatenate(
                [jnp.zeros((c, -s), x.dtype), x[:, :HW + s]], axis=1)

        # -- im2col slab init: row 0 = ones (bias fold), everything else 0.
        #    Rows past a stage's taps may hold stale finite data from a
        #    previous (taller) stage; harmless, their weight columns are 0. --
        im_ref[...] = jnp.zeros_like(im_ref)
        im_ref[0:1, :] = jnp.ones((1, HW), jnp.float32)

        def stage(x_in, s):
            orient, taps, cin = meta[s]
            for t, delta in enumerate(taps):
                tap = hshift(x_in, delta) if orient == "h" else vshift(x_in, delta)
                r0 = _TAP_ROW0 + t * cin
                im_ref[r0:r0 + cin, :] = tap
            return jnp.dot(w_ref[s], im_ref[...],
                           preferred_element_type=jnp.float32)

        y = stage(x_ref[...].reshape(C1, HW), 0)   # branch heads (stacked 4*d)
        for s in range(1, _NSTAGE):
            y = stage(y, s)
        o_ref[...] = jnp.maximum(y, 0.0).reshape(1, D4, HW).astype(o_ref.dtype)

    return kernel


# ----------------------------------------------------------------------------
# Public forward pass (NCHW in, NCHW out) -- one fused pallas_call
# ----------------------------------------------------------------------------
def msmsf_block(x_nchw, params):
    N, C1, H, W = x_nchw.shape
    D4 = params["fuse1234"]["w2"].shape[-1]        # = out_channels
    HW = H * W

    packed_w, KPAD = _pack_weights(params, C1, D4)
    x_flat = x_nchw.reshape(N, C1, HW)             # lane-dense activations
    kernel = _make_kernel(C1, D4, H, W, KPAD)

    out = pl.pallas_call(
        kernel,
        out_shape=jax.ShapeDtypeStruct((N, D4, HW), x_nchw.dtype),
        grid_spec=pltpu.PrefetchScalarGridSpec(
            num_scalar_prefetch=0,
            grid=(N,),
            in_specs=[
                pl.BlockSpec((1, C1, HW), lambda n: (n, 0, 0)),
                # single packed weight buffer, grid-invariant
                pl.BlockSpec((_NSTAGE, D4, KPAD), lambda n: (0, 0, 0)),
            ],
            out_specs=pl.BlockSpec((1, D4, HW), lambda n: (n, 0, 0)),
            scratch_shapes=[pltpu.VMEM((KPAD, HW), jnp.float32)],  # im2col slab
        ),
        compiler_params=pltpu.CompilerParams(
            dimension_semantics=("parallel",),     # batch across megacore TCs
        ),
    )(x_flat, packed_w)

    return out.reshape(N, D4, H, W)


# ----------------------------------------------------------------------------
# Pure-JAX reference (lax.conv) for the correctness check
# ----------------------------------------------------------------------------
def _conv_same_ref(x, w, b, relu=False):
    kh, kw, _, cout = w.shape
    y = lax.conv_general_dilated(
        x, w, window_strides=(1, 1),
        padding=((kh // 2, kh // 2), (kw // 2, kw // 2)),
        dimension_numbers=("NCHW", "HWIO", "NCHW"))
    y = y + b.reshape(1, cout, 1, 1)
    if relu:
        y = jnp.maximum(y, 0.0)
    return y


def _two_conv_ref(x, p, relu=False):
    x = _conv_same_ref(x, p["w1"], p["b1"])
    return _conv_same_ref(x, p["w2"], p["b2"], relu=relu)


def msmsf_block_ref(x, params):
    x1 = _two_conv_ref(x, params["conv1_1"])
    x1 = _two_conv_ref(x1, params["conv1_2"])
    x2 = _two_conv_ref(x, params["conv2_1"])
    x2 = _two_conv_ref(x2, params["conv2_2"])
    x3 = _two_conv_ref(x, params["conv3_1"])
    x3 = _two_conv_ref(x3, params["conv3_2"])
    x4 = _two_conv_ref(x, params["conv4_1"])
    x4 = _two_conv_ref(x4, params["conv4_2"])
    x12 = _two_conv_ref(jnp.concatenate([x1, x2], axis=1), params["fuse12"])
    x34 = _two_conv_ref(jnp.concatenate([x3, x4], axis=1), params["fuse34"])
    return _two_conv_ref(jnp.concatenate([x12, x34], axis=1),
                         params["fuse1234"], relu=True)


if __name__ == "__main__":
    key = jax.random.PRNGKey(0)
    k_x, k_p = jax.random.split(key)

    N, C_in, H, W = 2, 4, 16, 16
    C_out = 8  # out_dim = 2

    x = jax.random.normal(k_x, (N, C_in, H, W), jnp.float32)
    params = init_msmsf_params(k_p, C_in, C_out)

    fwd = jax.jit(msmsf_block)
    out = jax.block_until_ready(fwd(x, params))
    assert out.shape == (N, C_out, H, W), out.shape

    ref = msmsf_block_ref(x, params)
    err = float(jnp.max(jnp.abs(out - ref)))
    assert jnp.allclose(out, ref, atol=1e-3, rtol=1e-3), err

    print("KERNEL_OK")
</pallas_src>

<mosaic_0001>
module attributes {stable_mosaic.version = 11 : i64} {
  func.func @kernel(%arg0: i32, %arg1: memref<1x4x256xf32, #tpu.memory_space<vmem>>, %arg2: memref<8x8x80xf32, #tpu.memory_space<vmem>>, %arg3: memref<1x8x256xf32, #tpu.memory_space<vmem>>, %arg4: memref<80x256xf32, #tpu.memory_space<vmem>>) attributes {dimension_semantics = [#tpu.dimension_semantics<parallel>], iteration_bounds = array<i64: 2>, scalar_prefetch = 0 : i64, scratch_operands = 1 : i64, tpu.core_type = #tpu.core_type<tc>, window_params = [{transform_indices = @transform_0, window_bounds = array<i64: 1, 4, 256>}, {pipeline_mode = #tpu.pipeline_mode<synchronous>, transform_indices = @transform_1, window_bounds = array<i64: 8, 8, 80>}, {transform_indices = @transform_2, window_bounds = array<i64: 1, 8, 256>}]} {
    %0 = tpu.iota {dimensions = array<i32: 1>} : vector<1x256xi32>
    %c15_i32 = arith.constant 15 : i32
    %1 = vector.broadcast %c15_i32 : i32 to vector<1x256xi32>
    %2 = arith.andi %0, %1 : vector<1x256xi32>
    %c-4_i32 = arith.constant -4 : i32
    %3 = vector.broadcast %c-4_i32 : i32 to vector<1x256xi32>
    %4 = arith.addi %2, %3 : vector<1x256xi32>
    %c0_i32 = arith.constant 0 : i32
    %5 = vector.broadcast %c0_i32 : i32 to vector<1x256xi32>
    %6 = arith.cmpi sge, %4, %5 : vector<1x256xi32>
    %c16_i32 = arith.constant 16 : i32
    %7 = vector.broadcast %c16_i32 : i32 to vector<1x256xi32>
    %8 = arith.cmpi slt, %4, %7 : vector<1x256xi32>
    %9 = arith.andi %6, %8 : vector<1x256xi1>
    %10 = arith.extui %9 : vector<1x256xi1> to vector<1x256xi32>
    %11 = arith.sitofp %10 : vector<1x256xi32> to vector<1x256xf32>
    %c-3_i32 = arith.constant -3 : i32
    %12 = vector.broadcast %c-3_i32 : i32 to vector<1x256xi32>
    %13 = arith.addi %2, %12 : vector<1x256xi32>
    %c0_i32_0 = arith.constant 0 : i32
    %14 = vector.broadcast %c0_i32_0 : i32 to vector<1x256xi32>
    %15 = arith.cmpi sge, %13, %14 : vector<1x256xi32>
    %c16_i32_1 = arith.constant 16 : i32
    %16 = vector.broadcast %c16_i32_1 : i32 to vector<1x256xi32>
    %17 = arith.cmpi slt, %13, %16 : vector<1x256xi32>
    %18 = arith.andi %15, %17 : vector<1x256xi1>
    %19 = arith.extui %18 : vector<1x256xi1> to vector<1x256xi32>
    %20 = arith.sitofp %19 : vector<1x256xi32> to vector<1x256xf32>
    %c-2_i32 = arith.constant -2 : i32
    %21 = vector.broadcast %c-2_i32 : i32 to vector<1x256xi32>
    %22 = arith.addi %2, %21 : vector<1x256xi32>
    %c0_i32_2 = arith.constant 0 : i32
    %23 = vector.broadcast %c0_i32_2 : i32 to vector<1x256xi32>
    %24 = arith.cmpi sge, %22, %23 : vector<1x256xi32>
    %c16_i32_3 = arith.constant 16 : i32
    %25 = vector.broadcast %c16_i32_3 : i32 to vector<1x256xi32>
    %26 = arith.cmpi slt, %22, %25 : vector<1x256xi32>
    %27 = arith.andi %24, %26 : vector<1x256xi1>
    %28 = arith.extui %27 : vector<1x256xi1> to vector<1x256xi32>
    %29 = arith.sitofp %28 : vector<1x256xi32> to vector<1x256xf32>
    %c-1_i32 = arith.constant -1 : i32
    %30 = vector.broadcast %c-1_i32 : i32 to vector<1x256xi32>
    %31 = arith.addi %2, %30 : vector<1x256xi32>
    %c0_i32_4 = arith.constant 0 : i32
    %32 = vector.broadcast %c0_i32_4 : i32 to vector<1x256xi32>
    %33 = arith.cmpi sge, %31, %32 : vector<1x256xi32>
    %c16_i32_5 = arith.constant 16 : i32
    %34 = vector.broadcast %c16_i32_5 : i32 to vector<1x256xi32>
    %35 = arith.cmpi slt, %31, %34 : vector<1x256xi32>
    %36 = arith.andi %33, %35 : vector<1x256xi1>
    %37 = arith.extui %36 : vector<1x256xi1> to vector<1x256xi32>
    %38 = arith.sitofp %37 : vector<1x256xi32> to vector<1x256xf32>
    %c1_i32 = arith.constant 1 : i32
    %39 = vector.broadcast %c1_i32 : i32 to vector<1x256xi32>
    %40 = arith.addi %2, %39 : vector<1x256xi32>
    %c0_i32_6 = arith.constant 0 : i32
    %41 = vector.broadcast %c0_i32_6 : i32 to vector<1x256xi32>
    %42 = arith.cmpi sge, %40, %41 : vector<1x256xi32>
    %c16_i32_7 = arith.constant 16 : i32
    %43 = vector.broadcast %c16_i32_7 : i32 to vector<1x256xi32>
    %44 = arith.cmpi slt, %40, %43 : vector<1x256xi32>
    %45 = arith.andi %42, %44 : vector<1x256xi1>
    %46 = arith.extui %45 : vector<1x256xi1> to vector<1x256xi32>
    %47 = arith.sitofp %46 : vector<1x256xi32> to vector<1x256xf32>
    %c2_i32 = arith.constant 2 : i32
    %48 = vector.broadcast %c2_i32 : i32 to vector<1x256xi32>
    %49 = arith.addi %2, %48 : vector<1x256xi32>
    %c0_i32_8 = arith.constant 0 : i32
    %50 = vector.broadcast %c0_i32_8 : i32 to vector<1x256xi32>
    %51 = arith.cmpi sge, %49, %50 : vector<1x256xi32>
    %c16_i32_9 = arith.constant 16 : i32
    %52 = vector.broadcast %c16_i32_9 : i32 to vector<1x256xi32>
    %53 = arith.cmpi slt, %49, %52 : vector<1x256xi32>
    %54 = arith.andi %51, %53 : vector<1x256xi1>
    %55 = arith.extui %54 : vector<1x256xi1> to vector<1x256xi32>
    %56 = arith.sitofp %55 : vector<1x256xi32> to vector<1x256xf32>
    %c3_i32 = arith.constant 3 : i32
    %57 = vector.broadcast %c3_i32 : i32 to vector<1x256xi32>
    %58 = arith.addi %2, %57 : vector<1x256xi32>
    %c0_i32_10 = arith.constant 0 : i32
    %59 = vector.broadcast %c0_i32_10 : i32 to vector<1x256xi32>
    %60 = arith.cmpi sge, %58, %59 : vector<1x256xi32>
    %c16_i32_11 = arith.constant 16 : i32
    %61 = vector.broadcast %c16_i32_11 : i32 to vector<1x256xi32>
    %62 = arith.cmpi slt, %58, %61 : vector<1x256xi32>
    %63 = arith.andi %60, %62 : vector<1x256xi1>
    %64 = arith.extui %63 : vector<1x256xi1> to vector<1x256xi32>
    %65 = arith.sitofp %64 : vector<1x256xi32> to vector<1x256xf32>
    %c4_i32 = arith.constant 4 : i32
    %66 = vector.broadcast %c4_i32 : i32 to vector<1x256xi32>
    %67 = arith.addi %2, %66 : vector<1x256xi32>
    %c0_i32_12 = arith.constant 0 : i32
    %68 = vector.broadcast %c0_i32_12 : i32 to vector<1x256xi32>
    %69 = arith.cmpi sge, %67, %68 : vector<1x256xi32>
    %c16_i32_13 = arith.constant 16 : i32
    %70 = vector.broadcast %c16_i32_13 : i32 to vector<1x256xi32>
    %71 = arith.cmpi slt, %67, %70 : vector<1x256xi32>
    %72 = arith.andi %69, %71 : vector<1x256xi1>
    %73 = arith.extui %72 : vector<1x256xi1> to vector<1x256xi32>
    %74 = arith.sitofp %73 : vector<1x256xi32> to vector<1x256xf32>
    %cst = arith.constant 0.000000e+00 : f32
    %75 = vector.broadcast %cst : f32 to vector<80x256xf32>
    %c0 = arith.constant 0 : index
    %c0_14 = arith.constant 0 : index
    %76 = vector.load %arg4[%c0, %c0_14] : memref<80x256xf32, #tpu.memory_space<vmem>>, vector<80x256xf32>
    tpu.vector_store %arg4[%c0, %c0_14], %75 {strides = array<i32>} : memref<80x256xf32, #tpu.memory_space<vmem>>, vector<80x256xf32>,
    %cst_15 = arith.constant 1.000000e+00 : f32
    %77 = vector.broadcast %cst_15 : f32 to vector<1x256xf32>
    %c0_16 = arith.constant 0 : index
    %c0_17 = arith.constant 0 : index
    %78 = vector.load %arg4[%c0_16, %c0_17] : memref<80x256xf32, #tpu.memory_space<vmem>>, vector<1x256xf32>
    tpu.vector_store %arg4[%c0_16, %c0_17], %77 {strides = array<i32>} : memref<80x256xf32, #tpu.memory_space<vmem>>, vector<1x256xf32>,
    %c0_18 = arith.constant 0 : index
    %c0_19 = arith.constant 0 : index
    %c0_20 = arith.constant 0 : index
    %79 = vector.load %arg1[%c0_18, %c0_19, %c0_20] : memref<1x4x256xf32, #tpu.memory_space<vmem>>, vector<1x4x256xf32>
    %80 = vector.shape_cast %79 : vector<1x4x256xf32> to vector<4x256xf32>
    %cst_21 = arith.constant 0.000000e+00 : f32
    %81 = vector.broadcast %cst_21 : f32 to vector<4x1xf32>
    %82 = vector.extract_strided_slice %80 {offsets = [0, 0], sizes = [4, 255], strides = [1, 1]} : vector<4x256xf32> to vector<4x255xf32>
    %83 = tpu.concatenate %81, %82 in 1 : vector<4x1xf32>, vector<4x255xf32> -> vector<4x256xf32>
    %84 = vector.broadcast %38 : vector<1x256xf32> to vector<4x256xf32>
    %85 = arith.mulf %83, %84 : vector<4x256xf32>
    %c8 = arith.constant 8 : index
    %c0_22 = arith.constant 0 : index
    %86 = vector.load %arg4[%c8, %c0_22] : memref<80x256xf32, #tpu.memory_space<vmem>>, vector<4x256xf32>
    tpu.vector_store %arg4[%c8, %c0_22], %85 {strides = array<i32>} : memref<80x256xf32, #tpu.memory_space<vmem>>, vector<4x256xf32>,
    %c12 = arith.constant 12 : index
    %c0_23 = arith.constant 0 : index
    %87 = vector.load %arg4[%c12, %c0_23] : memref<80x256xf32, #tpu.memory_space<vmem>>, vector<4x256xf32>
    tpu.vector_store %arg4[%c12, %c0_23], %80 {strides = array<i32>} : memref<80x256xf32, #tpu.memory_space<vmem>>, vector<4x256xf32>,
    %88 = vector.extract_strided_slice %80 {offsets = [0, 1], sizes = [4, 255], strides = [1, 1]} : vector<4x256xf32> to vector<4x255xf32>
    %cst_24 = arith.constant 0.000000e+00 : f32
    %89 = vector.broadcast %cst_24 : f32 to vector<4x1xf32>
    %90 = tpu.concatenate %88, %89 in 1 : vector<4x255xf32>, vector<4x1xf32> -> vector<4x256xf32>
    %91 = vector.broadcast %47 : vector<1x256xf32> to vector<4x256xf32>
    %92 = arith.mulf %90, %91 : vector<4x256xf32>
    %c16 = arith.constant 16 : index
    %c0_25 = arith.constant 0 : index
    %93 = vector.load %arg4[%c16, %c0_25] : memref<80x256xf32, #tpu.memory_space<vmem>>, vector<4x256xf32>
    tpu.vector_store %arg4[%c16, %c0_25], %92 {strides = array<i32>} : memref<80x256xf32, #tpu.memory_space<vmem>>, vector<4x256xf32>,
    %c0_26 = arith.constant 0 : index
    %c0_27 = arith.constant 0 : index
    %c0_28 = arith.constant 0 : index
    %94 = vector.load %arg2[%c0_26, %c0_27, %c0_28] : memref<8x8x80xf32, #tpu.memory_space<vmem>>, vector<1x8x80xf32>
    %95 = vector.shape_cast %94 : vector<1x8x80xf32> to vector<8x80xf32>
    %c0_29 = arith.constant 0 : index
    %c0_30 = arith.constant 0 : index
    %96 = vector.load %arg4[%c0_29, %c0_30] : memref<80x256xf32, #tpu.memory_space<vmem>>, vector<80x256xf32>
    %cst_31 = arith.constant dense<0.000000e+00> : vector<8x256xf32>
    %97 = tpu.matmul %95, %96, %cst_31 {dimension_numbers = #tpu.dot_dimension_numbers<[1], [0], [0], [1], [0, 0, 1, 1], [], []>} : vector<8x80xf32>, vector<80x256xf32>, vector<8x256xf32> -> vector<8x256xf32>
    %cst_32 = arith.constant 0.000000e+00 : f32
    %98 = vector.broadcast %cst_32 : f32 to vector<8x64xf32>
    %99 = vector.extract_strided_slice %97 {offsets = [0, 0], sizes = [8, 192], strides = [1, 1]} : vector<8x256xf32> to vector<8x192xf32>
    %100 = tpu.concatenate %98, %99 in 1 : vector<8x64xf32>, vector<8x192xf32> -> vector<8x256xf32>
    %c8_33 = arith.constant 8 : index
    %c0_34 = arith.constant 0 : index
    %101 = vector.load %arg4[%c8_33, %c0_34] : memref<80x256xf32, #tpu.memory_space<vmem>>, vector<8x256xf32>
    tpu.vector_store %arg4[%c8_33, %c0_34], %100 {strides = array<i32>} : memref<80x256xf32, #tpu.memory_space<vmem>>, vector<8x256xf32>,
    %cst_35 = arith.constant 0.000000e+00 : f32
    %102 = vector.broadcast %cst_35 : f32 to vector<8x48xf32>
    %103 = vector.extract_strided_slice %97 {offsets = [0, 0], sizes = [8, 208], strides = [1, 1]} : vector<8x256xf32> to vector<8x208xf32>
    %104 = tpu.concatenate %102, %103 in 1 : vector<8x48xf32>, vector<8x208xf32> -> vector<8x256xf32>
    %c16_36 = arith.constant 16 : index
    %c0_37 = arith.constant 0 : index
    %105 = vector.load %arg4[%c16_36, %c0_37] : memref<80x256xf32, #tpu.memory_space<vmem>>, vector<8x256xf32>
    tpu.vector_store %arg4[%c16_36, %c0_37], %104 {strides = array<i32>} : memref<80x256xf32, #tpu.memory_space<vmem>>, vector<8x256xf32>,
    %cst_38 = arith.constant 0.000000e+00 : f32
    %106 = vector.broadcast %cst_38 : f32 to vector<8x32xf32>
    %107 = vector.extract_strided_slice %97 {offsets = [0, 0], sizes = [8, 224], strides = [1, 1]} : vector<8x256xf32> to vector<8x224xf32>
    %108 = tpu.concatenate %106, %107 in 1 : vector<8x32xf32>, vector<8x224xf32> -> vector<8x256xf32>
    %c24 = arith.constant 24 : index
    %c0_39 = arith.constant 0 : index
    %109 = vector.load %arg4[%c24, %c0_39] : memref<80x256xf32, #tpu.memory_space<vmem>>, vector<8x256xf32>
    tpu.vector_store %arg4[%c24, %c0_39], %108 {strides = array<i32>} : memref<80x256xf32, #tpu.memory_space<vmem>>, vector<8x256xf32>,
    %cst_40 = arith.constant 0.000000e+00 : f32
    %110 = vector.broadcast %cst_40 : f32 to vector<8x16xf32>
    %111 = vector.extract_strided_slice %97 {offsets = [0, 0], sizes = [8, 240], strides = [1, 1]} : vector<8x256xf32> to vector<8x240xf32>
    %112 = tpu.concatenate %110, %111 in 1 : vector<8x16xf32>, vector<8x240xf32> -> vector<8x256xf32>
    %c32 = arith.constant 32 : index
    %c0_41 = arith.constant 0 : index
    %113 = vector.load %arg4[%c32, %c0_41] : memref<80x256xf32, #tpu.memory_space<vmem>>, vector<8x256xf32>
    tpu.vector_store %arg4[%c32, %c0_41], %112 {strides = array<i32>} : memref<80x256xf32, #tpu.memory_space<vmem>>, vector<8x256xf32>,
    %c40 = arith.constant 40 : index
    %c0_42 = arith.constant 0 : index
    %114 = vector.load %arg4[%c40, %c0_42] : memref<80x256xf32, #tpu.memory_space<vmem>>, vector<8x256xf32>
    tpu.vector_store %arg4[%c40, %c0_42], %97 {strides = array<i32>} : memref<80x256xf32, #tpu.memory_space<vmem>>, vector<8x256xf32>,
    %115 = vector.extract_strided_slice %97 {offsets = [0, 16], sizes = [8, 240], strides = [1, 1]} : vector<8x256xf32> to vector<8x240xf32>
    %cst_43 = arith.constant 0.000000e+00 : f32
    %116 = vector.broadcast %cst_43 : f32 to vector<8x16xf32>
    %117 = tpu.concatenate %115, %116 in 1 : vector<8x240xf32>, vector<8x16xf32> -> vector<8x256xf32>
    %c48 = arith.constant 48 : index
    %c0_44 = arith.constant 0 : index
    %118 = vector.load %arg4[%c48, %c0_44] : memref<80x256xf32, #tpu.memory_space<vmem>>, vector<8x256xf32>
    tpu.vector_store %arg4[%c48, %c0_44], %117 {strides = array<i32>} : memref<80x256xf32, #tpu.memory_space<vmem>>, vector<8x256xf32>,
    %119 = vector.extract_strided_slice %97 {offsets = [0, 32], sizes = [8, 224], strides = [1, 1]} : vector<8x256xf32> to vector<8x224xf32>
    %cst_45 = arith.constant 0.000000e+00 : f32
    %120 = vector.broadcast %cst_45 : f32 to vector<8x32xf32>
    %121 = tpu.concatenate %119, %120 in 1 : vector<8x224xf32>, vector<8x32xf32> -> vector<8x256xf32>
    %c56 = arith.constant 56 : index
    %c0_46 = arith.constant 0 : index
    %122 = vector.load %arg4[%c56, %c0_46] : memref<80x256xf32, #tpu.memory_space<vmem>>, vector<8x256xf32>
    tpu.vector_store %arg4[%c56, %c0_46], %121 {strides = array<i32>} : memref<80x256xf32, #tpu.memory_space<vmem>>, vector<8x256xf32>,
    %123 = vector.extract_strided_slice %97 {offsets = [0, 48], sizes = [8, 208], strides = [1, 1]} : vector<8x256xf32> to vector<8x208xf32>
    %cst_47 = arith.constant 0.000000e+00 : f32
    %124 = vector.broadcast %cst_47 : f32 to vector<8x48xf32>
    %125 = tpu.concatenate %123, %124 in 1 : vector<8x208xf32>, vector<8x48xf32> -> vector<8x256xf32>
    %c64 = arith.constant 64 : index
    %c0_48 = arith.constant 0 : index
    %126 = vector.load %arg4[%c64, %c0_48] : memref<80x256xf32, #tpu.memory_space<vmem>>, vector<8x256xf32>
    tpu.vector_store %arg4[%c64, %c0_48], %125 {strides = array<i32>} : memref<80x256xf32, #tpu.memory_space<vmem>>, vector<8x256xf32>,
    %127 = vector.extract_strided_slice %97 {offsets = [0, 64], sizes = [8, 192], strides = [1, 1]} : vector<8x256xf32> to vector<8x192xf32>
    %cst_49 = arith.constant 0.000000e+00 : f32
    %128 = vector.broadcast %cst_49 : f32 to vector<8x64xf32>
    %129 = tpu.concatenate %127, %128 in 1 : vector<8x192xf32>, vector<8x64xf32> -> vector<8x256xf32>
    %c72 = arith.constant 72 : index
    %c0_50 = arith.constant 0 : index
    %130 = vector.load %arg4[%c72, %c0_50] : memref<80x256xf32, #tpu.memory_space<vmem>>, vector<8x256xf32>
    tpu.vector_store %arg4[%c72, %c0_50], %129 {strides = array<i32>} : memref<80x256xf32, #tpu.memory_space<vmem>>, vector<8x256xf32>,
    %c1 = arith.constant 1 : index
    %c0_51 = arith.constant 0 : index
    %c0_52 = arith.constant 0 : index
    %131 = vector.load %arg2[%c1, %c0_51, %c0_52] : memref<8x8x80xf32, #tpu.memory_space<vmem>>, vector<1x8x80xf32>
    %132 = vector.shape_cast %131 : vector<1x8x80xf32> to vector<8x80xf32>
    %c0_53 = arith.constant 0 : index
    %c0_54 = arith.constant 0 : index
    %133 = vector.load %arg4[%c0_53, %c0_54] : memref<80x256xf32, #tpu.memory_space<vmem>>, vector<80x256xf32>
    %cst_55 = arith.constant dense<0.000000e+00> : vector<8x256xf32>
    %134 = tpu.matmul %132, %133, %cst_55 {dimension_numbers = #tpu.dot_dimension_numbers<[1], [0], [0], [1], [0, 0, 1, 1], [], []>} : vector<8x80xf32>, vector<80x256xf32>, vector<8x256xf32> -> vector<8x256xf32>
    %cst_56 = arith.constant 0.000000e+00 : f32
    %135 = vector.broadcast %cst_56 : f32 to vector<8x4xf32>
    %136 = vector.extract_strided_slice %134 {offsets = [0, 0], sizes = [8, 252], strides = [1, 1]} : vector<8x256xf32> to vector<8x252xf32>
    %137 = tpu.concatenate %135, %136 in 1 : vector<8x4xf32>, vector<8x252xf32> -> vector<8x256xf32>
    %138 = vector.broadcast %11 : vector<1x256xf32> to vector<8x256xf32>
    %139 = arith.mulf %137, %138 : vector<8x256xf32>
    %c8_57 = arith.constant 8 : index
    %c0_58 = arith.constant 0 : index
    %140 = vector.load %arg4[%c8_57, %c0_58] : memref<80x256xf32, #tpu.memory_space<vmem>>, vector<8x256xf32>
    tpu.vector_store %arg4[%c8_57, %c0_58], %139 {strides = array<i32>} : memref<80x256xf32, #tpu.memory_space<vmem>>, vector<8x256xf32>,
    %cst_59 = arith.constant 0.000000e+00 : f32
    %141 = vector.broadcast %cst_59 : f32 to vector<8x3xf32>
    %142 = vector.extract_strided_slice %134 {offsets = [0, 0], sizes = [8, 253], strides = [1, 1]} : vector<8x256xf32> to vector<8x253xf32>
    %143 = tpu.concatenate %141, %142 in 1 : vector<8x3xf32>, vector<8x253xf32> -> vector<8x256xf32>
    %144 = vector.broadcast %20 : vector<1x256xf32> to vector<8x256xf32>
    %145 = arith.mulf %143, %144 : vector<8x256xf32>
    %c16_60 = arith.constant 16 : index
    %c0_61 = arith.constant 0 : index
    %146 = vector.load %arg4[%c16_60, %c0_61] : memref<80x256xf32, #tpu.memory_space<vmem>>, vector<8x256xf32>
    tpu.vector_store %arg4[%c16_60, %c0_61], %145 {strides = array<i32>} : memref<80x256xf32, #tpu.memory_space<vmem>>, vector<8x256xf32>,
    %cst_62 = arith.constant 0.000000e+00 : f32
    %147 = vector.broadcast %cst_62 : f32 to vector<8x2xf32>
    %148 = vector.extract_strided_slice %134 {offsets = [0, 0], sizes = [8, 254], strides = [1, 1]} : vector<8x256xf32> to vector<8x254xf32>
    %149 = tpu.concatenate %147, %148 in 1 : vector<8x2xf32>, vector<8x254xf32> -> vector<8x256xf32>
    %150 = vector.broadcast %29 : vector<1x256xf32> to vector<8x256xf32>
    %151 = arith.mulf %149, %150 : vector<8x256xf32>
    %c24_63 = arith.constant 24 : index
    %c0_64 = arith.constant 0 : index
    %152 = vector.load %arg4[%c24_63, %c0_64] : memref<80x256xf32, #tpu.memory_space<vmem>>, vector<8x256xf32>
    tpu.vector_store %arg4[%c24_63, %c0_64], %151 {strides = array<i32>} : memref<80x256xf32, #tpu.memory_space<vmem>>, vector<8x256xf32>,
    %cst_65 = arith.constant 0.000000e+00 : f32
    %153 = vector.broadcast %cst_65 : f32 to vector<8x1xf32>
    %154 = vector.extract_strided_slice %134 {offsets = [0, 0], sizes = [8, 255], strides = [1, 1]} : vector<8x256xf32> to vector<8x255xf32>
    %155 = tpu.concatenate %153, %154 in 1 : vector<8x1xf32>, vector<8x255xf32> -> vector<8x256xf32>
    %156 = vector.broadcast %38 : vector<1x256xf32> to vector<8x256xf32>
    %157 = arith.mulf %155, %156 : vector<8x256xf32>
    %c32_66 = arith.constant 32 : index
    %c0_67 = arith.constant 0 : index
    %158 = vector.load %arg4[%c32_66, %c0_67] : memref<80x256xf32, #tpu.memory_space<vmem>>, vector<8x256xf32>
    tpu.vector_store %arg4[%c32_66, %c0_67], %157 {strides = array<i32>} : memref<80x256xf32, #tpu.memory_space<vmem>>, vector<8x256xf32>,
    %c40_68 = arith.constant 40 : index
    %c0_69 = arith.constant 0 : index
    %159 = vector.load %arg4[%c40_68, %c0_69] : memref<80x256xf32, #tpu.memory_space<vmem>>, vector<8x256xf32>
    tpu.vector_store %arg4[%c40_68, %c0_69], %134 {strides = array<i32>} : memref<80x256xf32, #tpu.memory_space<vmem>>, vector<8x256xf32>,
    %160 = vector.extract_strided_slice %134 {offsets = [0, 1], sizes = [8, 255], strides = [1, 1]} : vector<8x256xf32> to vector<8x255xf32>
    %cst_70 = arith.constant 0.000000e+00 : f32
    %161 = vector.broadcast %cst_70 : f32 to vector<8x1xf32>
    %162 = tpu.concatenate %160, %161 in 1 : vector<8x255xf32>, vector<8x1xf32> -> vector<8x256xf32>
    %163 = vector.broadcast %47 : vector<1x256xf32> to vector<8x256xf32>
    %164 = arith.mulf %162, %163 : vector<8x256xf32>
    %c48_71 = arith.constant 48 : index
    %c0_72 = arith.constant 0 : index
    %165 = vector.load %arg4[%c48_71, %c0_72] : memref<80x256xf32, #tpu.memory_space<vmem>>, vector<8x256xf32>
    tpu.vector_store %arg4[%c48_71, %c0_72], %164 {strides = array<i32>} : memref<80x256xf32, #tpu.memory_space<vmem>>, vector<8x256xf32>,
    %166 = vector.extract_strided_slice %134 {offsets = [0, 2], sizes = [8, 254], strides = [1, 1]} : vector<8x256xf32> to vector<8x254xf32>
    %cst_73 = arith.constant 0.000000e+00 : f32
    %167 = vector.broadcast %cst_73 : f32 to vector<8x2xf32>
    %168 = tpu.concatenate %166, %167 in 1 : vector<8x254xf32>, vector<8x2xf32> -> vector<8x256xf32>
    %169 = vector.broadcast %56 : vector<1x256xf32> to vector<8x256xf32>
    %170 = arith.mulf %168, %169 : vector<8x256xf32>
    %c56_74 = arith.constant 56 : index
    %c0_75 = arith.constant 0 : index
    %171 = vector.load %arg4[%c56_74, %c0_75] : memref<80x256xf32, #tpu.memory_space<vmem>>, vector<8x256xf32>
    tpu.vector_store %arg4[%c56_74, %c0_75], %170 {strides = array<i32>} : memref<80x256xf32, #tpu.memory_space<vmem>>, vector<8x256xf32>,
    %172 = vector.extract_strided_slice %134 {offsets = [0, 3], sizes = [8, 253], strides = [1, 1]} : vector<8x256xf32> to vector<8x253xf32>
    %cst_76 = arith.constant 0.000000e+00 : f32
    %173 = vector.broadcast %cst_76 : f32 to vector<8x3xf32>
    %174 = tpu.concatenate %172, %173 in 1 : vector<8x253xf32>, vector<8x3xf32> -> vector<8x256xf32>
    %175 = vector.broadcast %65 : vector<1x256xf32> to vector<8x256xf32>
    %176 = arith.mulf %174, %175 : vector<8x256xf32>
    %c64_77 = arith.constant 64 : index
    %c0_78 = arith.constant 0 : index
    %177 = vector.load %arg4[%c64_77, %c0_78] : memref<80x256xf32, #tpu.memory_space<vmem>>, vector<8x256xf32>
    tpu.vector_store %arg4[%c64_77, %c0_78], %176 {strides = array<i32>} : memref<80x256xf32, #tpu.memory_space<vmem>>, vector<8x256xf32>,
    %178 = vector.extract_strided_slice %134 {offsets = [0, 4], sizes = [8, 252], strides = [1, 1]} : vector<8x256xf32> to vector<8x252xf32>
    %cst_79 = arith.constant 0.000000e+00 : f32
    %179 = vector.broadcast %cst_79 : f32 to vector<8x4xf32>
    %180 = tpu.concatenate %178, %179 in 1 : vector<8x252xf32>, vector<8x4xf32> -> vector<8x256xf32>
    %181 = vector.broadcast %74 : vector<1x256xf32> to vector<8x256xf32>
    %182 = arith.mulf %180, %181 : vector<8x256xf32>
    %c72_80 = arith.constant 72 : index
    %c0_81 = arith.constant 0 : index
    %183 = vector.load %arg4[%c72_80, %c0_81] : memref<80x256xf32, #tpu.memory_space<vmem>>, vector<8x256xf32>
    tpu.vector_store %arg4[%c72_80, %c0_81], %182 {strides = array<i32>} : memref<80x256xf32, #tpu.memory_space<vmem>>, vector<8x256xf32>,
    %c2 = arith.constant 2 : index
    %c0_82 = arith.constant 0 : index
    %c0_83 = arith.constant 0 : index
    %184 = vector.load %arg2[%c2, %c0_82, %c0_83] : memref<8x8x80xf32, #tpu.memory_space<vmem>>, vector<1x8x80xf32>
    %185 = vector.shape_cast %184 : vector<1x8x80xf32> to vector<8x80xf32>
    %c0_84 = arith.constant 0 : index
    %c0_85 = arith.constant 0 : index
    %186 = vector.load %arg4[%c0_84, %c0_85] : memref<80x256xf32, #tpu.memory_space<vmem>>, vector<80x256xf32>
    %cst_86 = arith.constant dense<0.000000e+00> : vector<8x256xf32>
    %187 = tpu.matmul %185, %186, %cst_86 {dimension_numbers = #tpu.dot_dimension_numbers<[1], [0], [0], [1], [0, 0, 1, 1], [], []>} : vector<8x80xf32>, vector<80x256xf32>, vector<8x256xf32> -> vector<8x256xf32>
    %cst_87 = arith.constant 0.000000e+00 : f32
    %188 = vector.broadcast %cst_87 : f32 to vector<8x16xf32>
    %189 = vector.extract_strided_slice %187 {offsets = [0, 0], sizes = [8, 240], strides = [1, 1]} : vector<8x256xf32> to vector<8x240xf32>
    %190 = tpu.concatenate %188, %189 in 1 : vector<8x16xf32>, vector<8x240xf32> -> vector<8x256xf32>
    %c8_88 = arith.constant 8 : index
    %c0_89 = arith.constant 0 : index
    %191 = vector.load %arg4[%c8_88, %c0_89] : memref<80x256xf32, #tpu.memory_space<vmem>>, vector<8x256xf32>
    tpu.vector_store %arg4[%c8_88, %c0_89], %190 {strides = array<i32>} : memref<80x256xf32, #tpu.memory_space<vmem>>, vector<8x256xf32>,
    %c16_90 = arith.constant 16 : index
    %c0_91 = arith.constant 0 : index
    %192 = vector.load %arg4[%c16_90, %c0_91] : memref<80x256xf32, #tpu.memory_space<vmem>>, vector<8x256xf32>
    tpu.vector_store %arg4[%c16_90, %c0_91], %187 {strides = array<i32>} : memref<80x256xf32, #tpu.memory_space<vmem>>, vector<8x256xf32>,
    %193 = vector.extract_strided_slice %187 {offsets = [0, 16], sizes = [8, 240], strides = [1, 1]} : vector<8x256xf32> to vector<8x240xf32>
    %cst_92 = arith.constant 0.000000e+00 : f32
    %194 = vector.broadcast %cst_92 : f32 to vector<8x16xf32>
    %195 = tpu.concatenate %193, %194 in 1 : vector<8x240xf32>, vector<8x16xf32> -> vector<8x256xf32>
    %c24_93 = arith.constant 24 : index
    %c0_94 = arith.constant 0 : index
    %196 = vector.load %arg4[%c24_93, %c0_94] : memref<80x256xf32, #tpu.memory_space<vmem>>, vector<8x256xf32>
    tpu.vector_store %arg4[%c24_93, %c0_94], %195 {strides = array<i32>} : memref<80x256xf32, #tpu.memory_space<vmem>>, vector<8x256xf32>,
    %c3 = arith.constant 3 : index
    %c0_95 = arith.constant 0 : index
    %c0_96 = arith.constant 0 : index
    %197 = vector.load %arg2[%c3, %c0_95, %c0_96] : memref<8x8x80xf32, #tpu.memory_space<vmem>>, vector<1x8x80xf32>
    %198 = vector.shape_cast %197 : vector<1x8x80xf32> to vector<8x80xf32>
    %c0_97 = arith.constant 0 : index
    %c0_98 = arith.constant 0 : index
    %199 = vector.load %arg4[%c0_97, %c0_98] : memref<80x256xf32, #tpu.memory_space<vmem>>, vector<80x256xf32>
    %cst_99 = arith.constant dense<0.000000e+00> : vector<8x256xf32>
    %200 = tpu.matmul %198, %199, %cst_99 {dimension_numbers = #tpu.dot_dimension_numbers<[1], [0], [0], [1], [0, 0, 1, 1], [], []>} : vector<8x80xf32>, vector<80x256xf32>, vector<8x256xf32> -> vector<8x256xf32>
    %cst_100 = arith.constant 0.000000e+00 : f32
    %201 = vector.broadcast %cst_100 : f32 to vector<8x1xf32>
    %202 = vector.extract_strided_slice %200 {offsets = [0, 0], sizes = [8, 255], strides = [1, 1]} : vector<8x256xf32> to vector<8x255xf32>
    %203 = tpu.concatenate %201, %202 in 1 : vector<8x1xf32>, vector<8x255xf32> -> vector<8x256xf32>
    %204 = vector.broadcast %38 : vector<1x256xf32> to vector<8x256xf32>
    %205 = arith.mulf %203, %204 : vector<8x256xf32>
    %c8_101 = arith.constant 8 : index
    %c0_102 = arith.constant 0 : index
    %206 = vector.load %arg4[%c8_101, %c0_102] : memref<80x256xf32, #tpu.memory_space<vmem>>, vector<8x256xf32>
    tpu.vector_store %arg4[%c8_101, %c0_102], %205 {strides = array<i32>} : memref<80x256xf32, #tpu.memory_space<vmem>>, vector<8x256xf32>,
    %c16_103 = arith.constant 16 : index
    %c0_104 = arith.constant 0 : index
    %207 = vector.load %arg4[%c16_103, %c0_104] : memref<80x256xf32, #tpu.memory_space<vmem>>, vector<8x256xf32>
    tpu.vector_store %arg4[%c16_103, %c0_104], %200 {strides = array<i32>} : memref<80x256xf32, #tpu.memory_space<vmem>>, vector<8x256xf32>,
    %208 = vector.extract_strided_slice %200 {offsets = [0, 1], sizes = [8, 255], strides = [1, 1]} : vector<8x256xf32> to vector<8x255xf32>
    %cst_105 = arith.constant 0.000000e+00 : f32
    %209 = vector.broadcast %cst_105 : f32 to vector<8x1xf32>
    %210 = tpu.concatenate %208, %209 in 1 : vector<8x255xf32>, vector<8x1xf32> -> vector<8x256xf32>
    %211 = vector.broadcast %47 : vector<1x256xf32> to vector<8x256xf32>
    %212 = arith.mulf %210, %211 : vector<8x256xf32>
    %c24_106 = arith.constant 24 : index
    %c0_107 = arith.constant 0 : index
    %213 = vector.load %arg4[%c24_106, %c0_107] : memref<80x256xf32, #tpu.memory_space<vmem>>, vector<8x256xf32>
    tpu.vector_store %arg4[%c24_106, %c0_107], %212 {strides = array<i32>} : memref<80x256xf32, #tpu.memory_space<vmem>>, vector<8x256xf32>,
    %c4 = arith.constant 4 : index
    %c0_108 = arith.constant 0 : index
    %c0_109 = arith.constant 0 : index
    %214 = vector.load %arg2[%c4, %c0_108, %c0_109] : memref<8x8x80xf32, #tpu.memory_space<vmem>>, vector<1x8x80xf32>
    %215 = vector.shape_cast %214 : vector<1x8x80xf32> to vector<8x80xf32>
    %c0_110 = arith.constant 0 : index
    %c0_111 = arith.constant 0 : index
    %216 = vector.load %arg4[%c0_110, %c0_111] : memref<80x256xf32, #tpu.memory_space<vmem>>, vector<80x256xf32>
    %cst_112 = arith.constant dense<0.000000e+00> : vector<8x256xf32>
    %217 = tpu.matmul %215, %216, %cst_112 {dimension_numbers = #tpu.dot_dimension_numbers<[1], [0], [0], [1], [0, 0, 1, 1], [], []>} : vector<8x80xf32>, vector<80x256xf32>, vector<8x256xf32> -> vector<8x256xf32>
    %cst_113 = arith.constant 0.000000e+00 : f32
    %218 = vector.broadcast %cst_113 : f32 to vector<8x16xf32>
    %219 = vector.extract_strided_slice %217 {offsets = [0, 0], sizes = [8, 240], strides = [1, 1]} : vector<8x256xf32> to vector<8x240xf32>
    %220 = tpu.concatenate %218, %219 in 1 : vector<8x16xf32>, vector<8x240xf32> -> vector<8x256xf32>
    %c8_114 = arith.constant 8 : index
    %c0_115 = arith.constant 0 : index
    %221 = vector.load %arg4[%c8_114, %c0_115] : memref<80x256xf32, #tpu.memory_space<vmem>>, vector<8x256xf32>
    tpu.vector_store %arg4[%c8_114, %c0_115], %220 {strides = array<i32>} : memref<80x256xf32, #tpu.memory_space<vmem>>, vector<8x256xf32>,
    %c16_116 = arith.constant 16 : index
    %c0_117 = arith.constant 0 : index
    %222 = vector.load %arg4[%c16_116, %c0_117] : memref<80x256xf32, #tpu.memory_space<vmem>>, vector<8x256xf32>
    tpu.vector_store %arg4[%c16_116, %c0_117], %217 {strides = array<i32>} : memref<80x256xf32, #tpu.memory_space<vmem>>, vector<8x256xf32>,
    %223 = vector.extract_strided_slice %217 {offsets = [0, 16], sizes = [8, 240], strides = [1, 1]} : vector<8x256xf32> to vector<8x240xf32>
    %cst_118 = arith.constant 0.000000e+00 : f32
    %224 = vector.broadcast %cst_118 : f32 to vector<8x16xf32>
    %225 = tpu.concatenate %223, %224 in 1 : vector<8x240xf32>, vector<8x16xf32> -> vector<8x256xf32>
    %c24_119 = arith.constant 24 : index
    %c0_120 = arith.constant 0 : index
    %226 = vector.load %arg4[%c24_119, %c0_120] : memref<80x256xf32, #tpu.memory_space<vmem>>, vector<8x256xf32>
    tpu.vector_store %arg4[%c24_119, %c0_120], %225 {strides = array<i32>} : memref<80x256xf32, #tpu.memory_space<vmem>>, vector<8x256xf32>,
    %c5 = arith.constant 5 : index
    %c0_121 = arith.constant 0 : index
    %c0_122 = arith.constant 0 : index
    %227 = vector.load %arg2[%c5, %c0_121, %c0_122] : memref<8x8x80xf32, #tpu.memory_space<vmem>>, vector<1x8x80xf32>
    %228 = vector.shape_cast %227 : vector<1x8x80xf32> to vector<8x80xf32>
    %c0_123 = arith.constant 0 : index
    %c0_124 = arith.constant 0 : index
    %229 = vector.load %arg4[%c0_123, %c0_124] : memref<80x256xf32, #tpu.memory_space<vmem>>, vector<80x256xf32>
    %cst_125 = arith.constant dense<0.000000e+00> : vector<8x256xf32>
    %230 = tpu.matmul %228, %229, %cst_125 {dimension_numbers = #tpu.dot_dimension_numbers<[1], [0], [0], [1], [0, 0, 1, 1], [], []>} : vector<8x80xf32>, vector<80x256xf32>, vector<8x256xf32> -> vector<8x256xf32>
    %cst_126 = arith.constant 0.000000e+00 : f32
    %231 = vector.broadcast %cst_126 : f32 to vector<8x1xf32>
    %232 = vector.extract_strided_slice %230 {offsets = [0, 0], sizes = [8, 255], strides = [1, 1]} : vector<8x256xf32> to vector<8x255xf32>
    %233 = tpu.concatenate %231, %232 in 1 : vector<8x1xf32>, vector<8x255xf32> -> vector<8x256xf32>
    %234 = vector.broadcast %38 : vector<1x256xf32> to vector<8x256xf32>
    %235 = arith.mulf %233, %234 : vector<8x256xf32>
    %c8_127 = arith.constant 8 : index
    %c0_128 = arith.constant 0 : index
    %236 = vector.load %arg4[%c8_127, %c0_128] : memref<80x256xf32, #tpu.memory_space<vmem>>, vector<8x256xf32>
    tpu.vector_store %arg4[%c8_127, %c0_128], %235 {strides = array<i32>} : memref<80x256xf32, #tpu.memory_space<vmem>>, vector<8x256xf32>,
    %c16_129 = arith.constant 16 : index
    %c0_130 = arith.constant 0 : index
    %237 = vector.load %arg4[%c16_129, %c0_130] : memref<80x256xf32, #tpu.memory_space<vmem>>, vector<8x256xf32>
    tpu.vector_store %arg4[%c16_129, %c0_130], %230 {strides = array<i32>} : memref<80x256xf32, #tpu.memory_space<vmem>>, vector<8x256xf32>,
    %238 = vector.extract_strided_slice %230 {offsets = [0, 1], sizes = [8, 255], strides = [1, 1]} : vector<8x256xf32> to vector<8x255xf32>
    %cst_131 = arith.constant 0.000000e+00 : f32
    %239 = vector.broadcast %cst_131 : f32 to vector<8x1xf32>
    %240 = tpu.concatenate %238, %239 in 1 : vector<8x255xf32>, vector<8x1xf32> -> vector<8x256xf32>
    %241 = vector.broadcast %47 : vector<1x256xf32> to vector<8x256xf32>
    %242 = arith.mulf %240, %241 : vector<8x256xf32>
    %c24_132 = arith.constant 24 : index
    %c0_133 = arith.constant 0 : index
    %243 = vector.load %arg4[%c24_132, %c0_133] : memref<80x256xf32, #tpu.memory_space<vmem>>, vector<8x256xf32>
    tpu.vector_store %arg4[%c24_132, %c0_133], %242 {strides = array<i32>} : memref<80x256xf32, #tpu.memory_space<vmem>>, vector<8x256xf32>,
    %c6 = arith.constant 6 : index
    %c0_134 = arith.constant 0 : index
    %c0_135 = arith.constant 0 : index
    %244 = vector.load %arg2[%c6, %c0_134, %c0_135] : memref<8x8x80xf32, #tpu.memory_space<vmem>>, vector<1x8x80xf32>
    %245 = vector.shape_cast %244 : vector<1x8x80xf32> to vector<8x80xf32>
    %c0_136 = arith.constant 0 : index
    %c0_137 = arith.constant 0 : index
    %246 = vector.load %arg4[%c0_136, %c0_137] : memref<80x256xf32, #tpu.memory_space<vmem>>, vector<80x256xf32>
    %cst_138 = arith.constant dense<0.000000e+00> : vector<8x256xf32>
    %247 = tpu.matmul %245, %246, %cst_138 {dimension_numbers = #tpu.dot_dimension_numbers<[1], [0], [0], [1], [0, 0, 1, 1], [], []>} : vector<8x80xf32>, vector<80x256xf32>, vector<8x256xf32> -> vector<8x256xf32>
    %cst_139 = arith.constant 0.000000e+00 : f32
    %248 = vector.broadcast %cst_139 : f32 to vector<8x16xf32>
    %249 = vector.extract_strided_slice %247 {offsets = [0, 0], sizes = [8, 240], strides = [1, 1]} : vector<8x256xf32> to vector<8x240xf32>
    %250 = tpu.concatenate %248, %249 in 1 : vector<8x16xf32>, vector<8x240xf32> -> vector<8x256xf32>
    %c8_140 = arith.constant 8 : index
    %c0_141 = arith.constant 0 : index
    %251 = vector.load %arg4[%c8_140, %c0_141] : memref<80x256xf32, #tpu.memory_space<vmem>>, vector<8x256xf32>
    tpu.vector_store %arg4[%c8_140, %c0_141], %250 {strides = array<i32>} : memref<80x256xf32, #tpu.memory_space<vmem>>, vector<8x256xf32>,
    %c16_142 = arith.constant 16 : index
    %c0_143 = arith.constant 0 : index
    %252 = vector.load %arg4[%c16_142, %c0_143] : memref<80x256xf32, #tpu.memory_space<vmem>>, vector<8x256xf32>
    tpu.vector_store %arg4[%c16_142, %c0_143], %247 {strides = array<i32>} : memref<80x256xf32, #tpu.memory_space<vmem>>, vector<8x256xf32>,
    %253 = vector.extract_strided_slice %247 {offsets = [0, 16], sizes = [8, 240], strides = [1, 1]} : vector<8x256xf32> to vector<8x240xf32>
    %cst_144 = arith.constant 0.000000e+00 : f32
    %254 = vector.broadcast %cst_144 : f32 to vector<8x16xf32>
    %255 = tpu.concatenate %253, %254 in 1 : vector<8x240xf32>, vector<8x16xf32> -> vector<8x256xf32>
    %c24_145 = arith.constant 24 : index
    %c0_146 = arith.constant 0 : index
    %256 = vector.load %arg4[%c24_145, %c0_146] : memref<80x256xf32, #tpu.memory_space<vmem>>, vector<8x256xf32>
    tpu.vector_store %arg4[%c24_145, %c0_146], %255 {strides = array<i32>} : memref<80x256xf32, #tpu.memory_space<vmem>>, vector<8x256xf32>,
    %c7 = arith.constant 7 : index
    %c0_147 = arith.constant 0 : index
    %c0_148 = arith.constant 0 : index
    %257 = vector.load %arg2[%c7, %c0_147, %c0_148] : memref<8x8x80xf32, #tpu.memory_space<vmem>>, vector<1x8x80xf32>
    %258 = vector.shape_cast %257 : vector<1x8x80xf32> to vector<8x80xf32>
    %c0_149 = arith.constant 0 : index
    %c0_150 = arith.constant 0 : index
    %259 = vector.load %arg4[%c0_149, %c0_150] : memref<80x256xf32, #tpu.memory_space<vmem>>, vector<80x256xf32>
    %cst_151 = arith.constant dense<0.000000e+00> : vector<8x256xf32>
    %260 = tpu.matmul %258, %259, %cst_151 {dimension_numbers = #tpu.dot_dimension_numbers<[1], [0], [0], [1], [0, 0, 1, 1], [], []>} : vector<8x80xf32>, vector<80x256xf32>, vector<8x256xf32> -> vector<8x256xf32>
    %cst_152 = arith.constant 0.000000e+00 : f32
    %261 = vector.broadcast %cst_152 : f32 to vector<8x256xf32>
    %262 = arith.maximumf %260, %261 : vector<8x256xf32>
    %263 = vector.shape_cast %262 : vector<8x256xf32> to vector<1x8x256xf32>
    %c0_153 = arith.constant 0 : index
    %c0_154 = arith.constant 0 : index
    %c0_155 = arith.constant 0 : index
    %264 = vector.load %arg3[%c0_153, %c0_154, %c0_155] : memref<1x8x256xf32, #tpu.memory_space<vmem>>, vector<1x8x256xf32>
    tpu.vector_store %arg3[%c0_153, %c0_154, %c0_155], %263 {strides = array<i32>} : memref<1x8x256xf32, #tpu.memory_space<vmem>>, vector<1x8x256xf32>,
    return
  }
  func.func @transform_0(%arg0: i32) -> (i32, i32, i32) {
    %c0_i32 = arith.constant 0 : i32
    %c0_i32_0 = arith.constant 0 : i32
    %c0_i32_1 = arith.constant 0 : i32
    return %arg0, %c0_i32, %c0_i32_0 : i32, i32, i32
  }
  func.func @transform_1(%arg0: i32) -> (i32, i32, i32) {
    %c0_i32 = arith.constant 0 : i32
    %c0_i32_0 = arith.constant 0 : i32
    %c0_i32_1 = arith.constant 0 : i32
    %c0_i32_2 = arith.constant 0 : i32
    return %c0_i32, %c0_i32_0, %c0_i32_1 : i32, i32, i32
  }
  func.func @transform_2(%arg0: i32) -> (i32, i32, i32) {
    %c0_i32 = arith.constant 0 : i32
    %c0_i32_0 = arith.constant 0 : i32
    %c0_i32_1 = arith.constant 0 : i32
    return %arg0, %c0_i32, %c0_i32_0 : i32, i32, i32
  }
}

</mosaic_0001>

<llo_original>
// kernel: msmsf_block.1
$region0: #{msmsf_block.1}
  #allocation0 [shape = 'u32[]', space=smem, size = 0x4, offset = 0x4, fixed_abs, tag = 'smem constant byte address 0x4 - core index']
  #allocation1 [shape = 'u32[144,128]{1,0:T(1,128)}', space=vmem, size = 0x12000, scoped, tag = 'internal scratch']
  #allocation2 [shape = 'f32[80,256]{1,0:T(8,128)}', space=vmem, size = 0x14000, scoped, tag = 'scratch operand']
  %s0 = inlined_call_operand.vmem [shape: f32[2,4,256], index: 0, kind: input, shape index: {}]
  %s1 = inlined_call_operand.vmem [shape: f32[8,8,80], index: 1, kind: input, shape index: {}]
  %s2 = inlined_call_operand.vmem [shape: f32[2,8,256], index: 2, kind: output, shape index: {}]
  %s3 = sld [smem:[#allocation0]]
  $region41: #{msmsf_block.1} parent=0
    _
  %s5 = ssub.s32 1, %s3
  %s6 = scalar_select 0, %s5, %s3
  loop: start=0, step=1, limit=4
  $region2: #{msmsf_block.1} parent=0 // loop_pre_header
    _
  $region3: #{msmsf_block.1} parent=0 // loop_header
    %s8 = sphi 0, %s12
    %p9 = scmp.ge.s32.totalorder %s8, 4
    %s18 = sphi 0, %s20
    %s21 = sphi 0, %s18
    %s22 = sphi 0, %s21
    %s38 = sphi 0, %s22
    %s42 = sphi 0, %s42
    %s44 = sphi 0, %s42
    %s45 = sphi 0, %s44
    %s59 = sphi 0, %s45
    %s65 = sphi 0, %s67
    %s68 = sphi 0, %s65
    %s69 = sphi 0, %s68
    %s85 = sphi 0, %s69
  $region4: #{msmsf_block.1} parent=0 // loop_header_branch
    %11 = sbr.rel (%p9) target = $region8
  $region5: #{msmsf_block.1} parent=0 // loop_body
    %s13 = ssub.s32 %s8, 1
    %s14 = ssub.s32 %s8, 2
    %s15 = sadd.s32 %s8, 1
    %s16 = ssub.s32 %s8, %s15
    %p17 = scmp.eq.s32.totalorder %s16, 0
    %s19 = sadd.s32 %s18, 1
    %s20 = scalar_select %p17, %s18, %s19
    %p23 = pneg %p17
    %p24 = scmp.eq.s32.totalorder %s8, 1
    %p25 = por %p23, %p24
    %p26 = scmp.ne.s32.totalorder %s18, %s21
    %p27 = scmp.eq.s32.totalorder %s8, 0
    %p28 = por %p26, %p27
    %p29 = scmp.ne.s32.totalorder %s18, %s21
    %p30 = scmp.eq.s32.totalorder %s13, 1
    %p31 = por %p29, %p30
    %p32 = scmp.ne.s32.totalorder %s21, %s22
    %p33 = scmp.eq.s32.totalorder %s13, 0
    %p34 = por %p32, %p33
    %p35 = scmp.ne.s32.totalorder %s21, %s22
    %p36 = scmp.eq.s32.totalorder %s14, 1
    %p37 = por %p35, %p36
    %p39 = scmp.ne.s32.totalorder %s22, %s38
    %p40 = scmp.eq.s32.totalorder %s14, 0
    %p41 = por %p39, %p40
    %s43 = sadd.s32 %s42, 1
    %p46 = scmp.eq.s32.totalorder %s8, 1
    %p47 = scmp.ne.s32.totalorder %s42, %s44
    %p48 = scmp.eq.s32.totalorder %s8, 0
    %p49 = por %p47, %p48
    %p50 = scmp.ne.s32.totalorder %s42, %s44
    %p51 = scmp.eq.s32.totalorder %s13, 1
    %p52 = por %p50, %p51
    %p53 = scmp.ne.s32.totalorder %s44, %s45
    %p54 = scmp.eq.s32.totalorder %s13, 0
    %p55 = por %p53, %p54
    %p56 = scmp.ne.s32.totalorder %s44, %s45
    %p57 = scmp.eq.s32.totalorder %s14, 1
    %p58 = por %p56, %p57
    %p60 = scmp.ne.s32.totalorder %s45, %s59
    %p61 = scmp.eq.s32.totalorder %s14, 0
    %p62 = por %p60, %p61
    %s63 = ssub.s32 %s8, %s15
    %p64 = scmp.eq.s32.totalorder %s63, 0
    %s66 = sadd.s32 %s65, 1
    %s67 = scalar_select %p64, %s65, %s66
    %p70 = pneg %p64
    %p71 = scmp.eq.s32.totalorder %s8, 1
    %p72 = por %p70, %p71
    %p73 = scmp.ne.s32.totalorder %s65, %s68
    %p74 = scmp.eq.s32.totalorder %s8, 0
    %p75 = por %p73, %p74
    %p76 = scmp.ne.s32.totalorder %s65, %s68
    %p77 = scmp.eq.s32.totalorder %s13, 1
    %p78 = por %p76, %p77
    %p79 = scmp.ne.s32.totalorder %s68, %s69
    %p80 = scmp.eq.s32.totalorder %s13, 0
    %p81 = por %p79, %p80
    %p82 = scmp.ne.s32.totalorder %s68, %s69
    %p83 = scmp.eq.s32.totalorder %s14, 1
    %p84 = por %p82, %p83
    %p86 = scmp.ne.s32.totalorder %s69, %s85
    %p87 = scmp.eq.s32.totalorder %s14, 0
    %p88 = por %p86, %p87
    %p89 = scmp.le.s32.totalorder 1, %s8
    %p90 = scmp.lt.s32.totalorder %s8, 3
    %p91 = pnand %p89, %p90
    %p92 = pneg %p91
    // Predicated region
    $region9: #{msmsf_block.1} parent=5 // pred_check
      _
    $region10: #{msmsf_block.1} parent=5 // pred_check_branch
      %94 = sbr.rel (%p91) target = $region12
    $region11: #{msmsf_block.1} parent=5 // pred_region
      %s95 = ssub.s32 %s8, 1
      // Predicated region
      $region13: #{msmsf_block.1} parent=11 // pred_check
        %p96 = pneg %p55
      $region14: #{msmsf_block.1} parent=11 // pred_check_branch
        %98 = sbr.rel (%p96) target = $region16
      $region15: #{msmsf_block.1} parent=11 // pred_region
        _
      $region16: #{msmsf_block.1} parent=11 // pred_fallthru
        _
    $region12: #{msmsf_block.1} parent=5 // pred_fallthru
      _
    %p99 = scmp.lt.s32.totalorder %s8, 2
    // Predicated region
    $region17: #{msmsf_block.1} parent=5 // pred_check
      %p100 = pneg %p99
    $region18: #{msmsf_block.1} parent=5 // pred_check_branch
      %102 = sbr.rel (%p100) target = $region20
    $region19: #{msmsf_block.1} parent=5 // pred_region
      // Predicated region
      $region21: #{msmsf_block.1} parent=19 // pred_check
        %p103 = pneg %p28
      $region22: #{msmsf_block.1} parent=19 // pred_check_branch
        %105 = sbr.rel (%p103) target = $region24
      $region23: #{msmsf_block.1} parent=19 // pred_region
        %p106 = scmp.lt.s32.totalorder %s8, 1
        %s107 = scalar_select %p106, %s8, 1
        %s108 = smul.addr %s107, 2
        %s109 = smul.addr %s108, 4
        %s110 = scalar_lea.vmem %s0, %s109
      $region24: #{msmsf_block.1} parent=19 // pred_fallthru
        _
    $region20: #{msmsf_block.1} parent=5 // pred_fallthru
      _
    %p111 = scmp.le.s32.totalorder 1, %s8
    %p112 = scmp.lt.s32.totalorder %s8, 3
    %p113 = pnand %p111, %p112
    %p114 = pneg %p113
    // Predicated region
    $region25: #{msmsf_block.1} parent=5 // pred_check
      _
    $region26: #{msmsf_block.1} parent=5 // pred_check_branch
      %116 = sbr.rel (%p113) target = $region28
    $region27: #{msmsf_block.1} parent=5 // pred_region
      %s117 = ssub.s32 %s8, 1
      %p118 = scmp.lt.s32.totalorder %s13, 1
      %s119 = scalar_select %p118, %s13, 1
      %s120 = smul.addr %s119, 2
      %s121 = smul.addr %s120, 4
      %s122 = scalar_lea.vmem %s0, %s121
      %p123 = pneg %p34
      %p124 = pneg %p31
      %p125 = pneg %p55
      %p126 = pneg %p52
      %p127 = pneg %p81
      %p128 = pneg %p78
      %p129 = scmp.lt.s32.totalorder %s13, 1
      %s130 = scalar_select %p129, %s13, 1
      %s131 = smul.addr %s130, 2
      %s132 = smul.addr %s131, 8
      %s133 = scalar_lea.vmem %s2, %s132
      %p134 = scmp.lt.s32.totalorder %s13, 1
      %s135 = scalar_select %p134, %s13, 1
      %s136 = smul.addr %s135, 2
      %s137 = smul.addr %s136, 4
      %s138 = scalar_lea.vmem %s0, %s137
      %p139 = scmp.lt.s32.totalorder %s13, 1
      %s140 = scalar_select %p139, %s13, 1
      %s141 = smul.addr %s140, 2
      %s142 = smul.addr %s141, 8
      %s143 = scalar_lea.vmem %s2, %s142
      %v144 = vlaneseq
      %v145 = vand.u32 %v144, 127
      %v146 = vadd.s32 %v145, 128
      %v147 = vand.u32 %v145, 15
      %v148 = vand.u32 %v146, 15
      %v149 = vadd.s32 %v147, 4294967292
      %v150 = vadd.s32 %v148, 4294967292
      %vm151 = vcmp.ge.s32.totalorder %v149, 0
      %vm152 = vcmp.ge.s32.totalorder %v150, 0
      %vm153 = vcmp.lt.s32.totalorder %v149, 16
      %vm154 = vcmp.lt.s32.totalorder %v150, 16
      %vm155 = vmand %vm151, %vm153
      %vm156 = vmand %vm152, %vm154
      %v157 = vsel %vm155, 1, 0
      %v158 = vsel %vm156, 1, 0
      %v159 = vcvt.s32.f32 %v157
      %v160 = vcvt.s32.f32 %v158
      %v161 = vadd.s32 %v147, 4294967293
      %v162 = vadd.s32 %v148, 4294967293
      %vm163 = vcmp.ge.s32.totalorder %v161, 0
      %vm164 = vcmp.ge.s32.totalorder %v162, 0
      %vm165 = vcmp.lt.s32.totalorder %v161, 16
      %vm166 = vcmp.lt.s32.totalorder %v162, 16
      %vm167 = vmand %vm163, %vm165
      %vm168 = vmand %vm164, %vm166
      %v169 = vsel %vm167, 1, 0
      %v170 = vsel %vm168, 1, 0
      %v171 = vcvt.s32.f32 %v169
      %v172 = vcvt.s32.f32 %v170
      %v173 = vadd.s32 %v147, 4294967294
      %v174 = vadd.s32 %v148, 4294967294
      %vm175 = vcmp.ge.s32.totalorder %v173, 0
      %vm176 = vcmp.ge.s32.totalorder %v174, 0
      %vm177 = vcmp.lt.s32.totalorder %v173, 16
      %vm178 = vcmp.lt.s32.totalorder %v174, 16
      %vm179 = vmand %vm175, %vm177
      %vm180 = vmand %vm176, %vm178
      %v181 = vsel %vm179, 1, 0
      %v182 = vsel %vm180, 1, 0
      %v183 = vcvt.s32.f32 %v181
      %v184 = vcvt.s32.f32 %v182
      %v185 = vadd.s32 %v147, 4294967295
      %v186 = vadd.s32 %v148, 4294967295
      %vm187 = vcmp.ge.s32.totalorder %v185, 0
      %vm188 = vcmp.ge.s32.totalorder %v186, 0
      %vm189 = vcmp.lt.s32.totalorder %v185, 16
      %vm190 = vcmp.lt.s32.totalorder %v186, 16
      %vm191 = vmand %vm187, %vm189
      %vm192 = vmand %vm188, %vm190
      %v193 = vsel %vm191, 1, 0
      %v194 = vsel %vm192, 1, 0
      %v195 = vcvt.s32.f32 %v193
      %v196 = vcvt.s32.f32 %v194
      %v197 = vadd.s32 %v147, 1
      %v198 = vadd.s32 %v148, 1
      %vm199 = vcmp.ge.s32.totalorder %v197, 0
      %vm200 = vcmp.ge.s32.totalorder %v198, 0
      %vm201 = vcmp.lt.s32.totalorder %v197, 16
      %vm202 = vcmp.lt.s32.totalorder %v198, 16
      %vm203 = vmand %vm199, %vm201
      %vm204 = vmand %vm200, %vm202
      %v205 = vsel %vm203, 1, 0
      %v206 = vsel %vm204, 1, 0
      %v207 = vcvt.s32.f32 %v205
      %v208 = vcvt.s32.f32 %v206
      %v209 = vadd.s32 %v147, 2
      %v210 = vadd.s32 %v148, 2
      %vm211 = vcmp.ge.s32.totalorder %v209, 0
      %vm212 = vcmp.ge.s32.totalorder %v210, 0
      %vm213 = vcmp.lt.s32.totalorder %v209, 16
      %vm214 = vcmp.lt.s32.totalorder %v210, 16
      %vm215 = vmand %vm211, %vm213
      %vm216 = vmand %vm212, %vm214
      %v217 = vsel %vm215, 1, 0
      %v218 = vsel %vm216, 1, 0
      %v219 = vcvt.s32.f32 %v217
      %v220 = vcvt.s32.f32 %v218
      %v221 = vadd.s32 %v147, 3
      %v222 = vadd.s32 %v148, 3
      %vm223 = vcmp.ge.s32.totalorder %v221, 0
      %vm224 = vcmp.ge.s32.totalorder %v222, 0
      %vm225 = vcmp.lt.s32.totalorder %v221, 16
      %vm226 = vcmp.lt.s32.totalorder %v222, 16
      %vm227 = vmand %vm223, %vm225
      %vm228 = vmand %vm224, %vm226
      %v229 = vsel %vm227, 1, 0
      %v230 = vsel %vm228, 1, 0
      %v231 = vcvt.s32.f32 %v229
      %v232 = vcvt.s32.f32 %v230
      %v233 = vadd.s32 %v147, 4
      %v234 = vadd.s32 %v148, 4
      %vm235 = vcmp.ge.s32.totalorder %v233, 0
      %vm236 = vcmp.ge.s32.totalorder %v234, 0
      %vm237 = vcmp.lt.s32.totalorder %v233, 16
      %vm238 = vcmp.lt.s32.totalorder %v234, 16
      %vm239 = vmand %vm235, %vm237
      %vm240 = vmand %vm236, %vm238
      %v241 = vsel %vm239, 1, 0
      %v242 = vsel %vm240, 1, 0
      %v243 = vcvt.s32.f32 %v241
      %v244 = vcvt.s32.f32 %v242
      %245 = vst [vmem:[#allocation2] sm:$0xff] 0.0
      %246 = vst [vmem:[#allocation2 + $0x8] sm:$0xff] 0.0
      %247 = vst [vmem:[#allocation2 + $0x10] sm:$0xff] 0.0
      %248 = vst [vmem:[#allocation2 + $0x18] sm:$0xff] 0.0
      %249 = vst [vmem:[#allocation2 + $0x20] sm:$0xff] 0.0
      %250 = vst [vmem:[#allocation2 + $0x28] sm:$0xff] 0.0
      %251 = vst [vmem:[#allocation2 + $0x30] sm:$0xff] 0.0
      %252 = vst [vmem:[#allocation2 + $0x38] sm:$0xff] 0.0
      %253 = vst [vmem:[#allocation2 + $0x40] sm:$0xff] 0.0
      %254 = vst [vmem:[#allocation2 + $0x48] sm:$0xff] 0.0
      %255 = vst [vmem:[#allocation2 + $0x50] sm:$0xff] 0.0
      %256 = vst [vmem:[#allocation2 + $0x58] sm:$0xff] 0.0
      %257 = vst [vmem:[#allocation2 + $0x60] sm:$0xff] 0.0
      %258 = vst [vmem:[#allocation2 + $0x68] sm:$0xff] 0.0
      %259 = vst [vmem:[#allocation2 + $0x70] sm:$0xff] 0.0
      %260 = vst [vmem:[#allocation2 + $0x78] sm:$0xff] 0.0
      %261 = vst [vmem:[#allocation2 + $0x80] sm:$0xff] 0.0
      %262 = vst [vmem:[#allocation2 + $0x88] sm:$0xff] 0.0
      %263 = vst [vmem:[#allocation2 + $0x90] sm:$0xff] 0.0
      %264 = vst [vmem:[#allocation2 + $0x98] sm:$0xff] 0.0
      %v265 = vlaneseq
      %vm266 = vcmp.ge.s32.totalorder %v265, 0
      %vm267 = vcmp.lt.s32.totalorder %v265, 256
      %vm268 = vmand %vm266, %vm267
      %269 = vst.msk [vmem:[#allocation2] ss:$8 sm:$0x3] %vm268, 1.0
      %270 = vst.msk [vmem:[#allocation2] ss:$8 sm:$0x0] %vm268, 1.0
      %v271 = vld [vmem:[%s138] sm:$0xff]
      %v273 = vcombine.high %v271, %v271
      %274 = vrot.lane.b32.xlu0 %v271, 1
      %v275 = vpop.permute.xlu0 %274
      %276 = vrot.lane.b32.xlu0 %v273, 1
      %v277 = vpop.permute.xlu0 %276
      %vm278 = vcmask 7168
      %v279 = vsel %vm278, %v275, %v277
      %v282 = vsel %vm278, 0.0, %v275
      %v283 = vmul.f32 %v282, %v195
      %v284 = vmul.f32 %v279, %v196
      %285 = vst [vmem:[#allocation2 + $0x10] sm:$0xf] %v283
      %286 = vst [vmem:[#allocation2 + $0x18] sm:$0xf] %v284
      %v287 = vcombine.low %v271, %v271
      %289 = vst [vmem:[#allocation2 + $0x10] sm:$0xf0] %v287
      %290 = vst [vmem:[#allocation2 + $0x18] sm:$0xf0] %v271
      %291 = vrot.lane.b32.xlu0 %v271, 127
      %v292 = vpop.permute.xlu0 %291
      %293 = vrot.lane.b32.xlu0 %v273, 127
      %v294 = vpop.permute.xlu0 %293
      %vm295 = vcmask 1039360
      %v296 = vsel %vm295, %v292, %v294
      %v299 = vsel %vm295, %v294, 0.0
      %v300 = vmul.f32 %v296, %v207
      %v301 = vmul.f32 %v299, %v208
      %302 = vst [vmem:[#allocation2 + $0x20] sm:$0xf] %v300
      %303 = vst [vmem:[#allocation2 + $0x28] sm:$0xf] %v301
      %v304 = vld [vmem:[%s1] sm:$0xff]
      %v305 = vld [vmem:[#allocation2] sm:$0xff]
      %v306 = vld [vmem:[#allocation2 + $0x8] sm:$0xff]
      %v307 = vld [vmem:[#allocation2 + $0x10] sm:$0xff]
      %v308 = vld [vmem:[#allocation2 + $0x18] sm:$0xff]
      %v309 = vld [vmem:[#allocation2 + $0x20] sm:$0xff]
      %v310 = vld [vmem:[#allocation2 + $0x28] sm:$0xff]
      %v311 = vld [vmem:[#allocation2 + $0x30] sm:$0xff]
      %v312 = vld [vmem:[#allocation2 + $0x38] sm:$0xff]
      %v313 = vld [vmem:[#allocation2 + $0x40] sm:$0xff]
      %v314 = vld [vmem:[#allocation2 + $0x48] sm:$0xff]
      %v315 = vld [vmem:[#allocation2 + $0x50] sm:$0xff]
      %v316 = vld [vmem:[#allocation2 + $0x58] sm:$0xff]
      %v317 = vld [vmem:[#allocation2 + $0x60] sm:$0xff]
      %v318 = vld [vmem:[#allocation2 + $0x68] sm:$0xff]
      %v319 = vld [vmem:[#allocation2 + $0x70] sm:$0xff]
      %v320 = vld [vmem:[#allocation2 + $0x78] sm:$0xff]
      %v321 = vld [vmem:[#allocation2 + $0x80] sm:$0xff]
      %v322 = vld [vmem:[#allocation2 + $0x88] sm:$0xff]
      %v323 = vld [vmem:[#allocation2 + $0x90] sm:$0xff]
      %v324 = vld [vmem:[#allocation2 + $0x98] sm:$0xff]
      %vm325 = vcmask 654336
      %v327 = vsel %vm325, %v304, 0
      %329 = vmatprep.subr.mxu0 %v306
      %330 = vmatpush1.msra.mxu0 %v305
      %331 = vmatprep.subr.mxu0 %v308
      %332 = vmatpush1.msra.mxu0 %v307
      %333 = vmatprep.subr.mxu0 %v310
      %334 = vmatpush1.msra.mxu0 %v309
      %335 = vmatprep.subr.mxu0 %v312
      %336 = vmatpush1.msra.mxu0 %v311
      %337 = vmatprep.subr.mxu0 %v314
      %338 = vmatpush1.msra.mxu0 %v313
      %339 = vmatprep.subr.mxu0 %v316
      %340 = vmatpush1.msra.mxu0 %v315
      %341 = vmatprep.subr.mxu0 %v318
      %342 = vmatpush1.msra.mxu0 %v317
      %343 = vmatprep.subr.mxu0 %v320
      %344 = vmatpush1.msra.mxu0 %v319
      %345 = vmatprep.subr.mxu0 %v322
      %346 = vmatpush1.msra.mxu0 %v321
      %347 = vmatprep.subr.mxu0 %v324
      %348 = vmatpush1.msra.mxu0 %v323
      %349 = vmatprep.subr.mxu0 0.0
      %350 = vmatpush1.msra.mxu0 0.0
      %351 = vmatprep.subr.mxu0 0.0
      %352 = vmatpush1.msra.mxu0 0.0
      %353 = vmatprep.subr.mxu0 0.0
      %354 = vmatpush1.msra.mxu0 0.0
      %355 = vmatprep.subr.mxu0 0.0
      %356 = vmatpush1.msra.mxu0 0.0
      %357 = vmatprep.subr.mxu0 0.0
      %358 = vmatpush1.msra.mxu0 0.0
      %359 = vmatprep.subr.mxu0 0.0
      %360 = vmatpush1.msra.mxu0 0.0
      %361 = vmatprep.subr.mxu0 0.0
      %362 = vmatpush1.msra.mxu0 0.0
      %363 = vmatprep.subr.mxu0 0.0
      %364 = vmatpush1.msra.mxu0 0.0
      %365 = vmatprep.subr.mxu0 0.0
      %366 = vmatpush1.msra.mxu0 0.0
      %367 = vmatprep.subr.mxu0 0.0
      %368 = vmatpush1.msra.mxu0 0.0
      %369 = vmatprep.subr.mxu0 0.0
      %370 = vmatpush1.msra.mxu0 0.0
      %371 = vmatprep.subr.mxu0 0.0
      %372 = vmatpush1.msra.mxu0 0.0
      %373 = vmatprep.subr.mxu0 0.0
      %374 = vmatpush1.msra.mxu0 0.0
      %375 = vmatprep.subr.mxu0 0.0
      %376 = vmatpush1.msra.mxu0 0.0
      %377 = vmatprep.subr.mxu0 0.0
      %378 = vmatpush1.msra.mxu0 0.0
      %379 = vmatprep.subr.mxu0 0.0
      %380 = vmatpush1.msra.mxu0 0.0
      %381 = vmatprep.subr.mxu0 0.0
      %382 = vmatpush1.msra.mxu0 0.0
      %383 = vmatprep.subr.mxu0 0.0
      %384 = vmatpush1.msra.mxu0 0.0
      %385 = vmatprep.subr.mxu0 0.0
      %386 = vmatpush1.msra.mxu0 0.0
      %387 = vmatprep.subr.mxu0 0.0
      %388 = vmatpush1.msra.mxu0 0.0
      %389 = vmatprep.subr.mxu0 0.0
      %390 = vmatpush1.msra.mxu0 0.0
      %391 = vmatprep.subr.mxu0 0.0
      %392 = vmatpush1.msra.mxu0 0.0
      %393 = vmatprep.mubr.f32.mxu0 0.0
      %394 = vmatmul.mubr.f32.gmra.mrb[0].mxu0 %v327
      %v395 = vpop.f32.mrb[0].mxu0
      %v396 = vadd.f32 0.0, %v395
      %v397 = vpop.f32.mrb[0].mxu0
      %v398 = vadd.f32 0.0, %v397
      %399 = vdwg.mxu0
      %402 = vrot.lane.b32.xlu0 %v396, 64
      %v403 = vpop.permute.xlu0 %402
      %404 = vrot.lane.b32.xlu0 %v398, 64
      %v405 = vpop.permute.xlu0 %404
      %vm406 = vcmask 523264
      %v407 = vsel %vm406, %v403, %v405
      %v410 = vsel %vm406, 0.0, %v403
      %411 = vst [vmem:[#allocation2 + $0x10] sm:$0xff] %v410
      %412 = vst [vmem:[#allocation2 + $0x18] sm:$0xff] %v407
      %413 = vrot.lane.b32.xlu0 %v396, 48
      %v414 = vpop.permute.xlu0 %413
      %415 = vrot.lane.b32.xlu0 %v398, 48
      %v416 = vpop.permute.xlu0 %415
      %vm417 = vcmask 392192
      %v418 = vsel %vm417, %v414, %v416
      %v421 = vsel %vm417, 0.0, %v414
      %422 = vst [vmem:[#allocation2 + $0x20] sm:$0xff] %v421
      %423 = vst [vmem:[#allocation2 + $0x28] sm:$0xff] %v418
      %424 = vrot.lane.b32.xlu0 %v396, 32
      %v425 = vpop.permute.xlu0 %424
      %426 = vrot.lane.b32.xlu0 %v398, 32
      %v427 = vpop.permute.xlu0 %426
      %vm428 = vcmask 261120
      %v429 = vsel %vm428, %v425, %v427
      %v432 = vsel %vm428, 0.0, %v425
      %433 = vst [vmem:[#allocation2 + $0x30] sm:$0xff] %v432
      %434 = vst [vmem:[#allocation2 + $0x38] sm:$0xff] %v429
      %435 = vrot.lane.b32.xlu0 %v396, 16
      %v436 = vpop.permute.xlu0 %435
      %437 = vrot.lane.b32.xlu0 %v398, 16
      %v438 = vpop.permute.xlu0 %437
      %vm439 = vcmask 130048
      %v440 = vsel %vm439, %v436, %v438
      %v443 = vsel %vm439, 0.0, %v436
      %444 = vst [vmem:[#allocation2 + $0x40] sm:$0xff] %v443
      %445 = vst [vmem:[#allocation2 + $0x48] sm:$0xff] %v440
      %446 = vst [vmem:[#allocation2 + $0x50] sm:$0xff] %v396
      %447 = vst [vmem:[#allocation2 + $0x58] sm:$0xff] %v398
      %448 = vrot.lane.b32.xlu0 %v396, 112
      %v449 = vpop.permute.xlu0 %448
      %450 = vrot.lane.b32.xlu0 %v398, 112
      %v451 = vpop.permute.xlu0 %450
      %vm452 = vcmask 916480
      %v453 = vsel %vm452, %v449, %v451
      %v456 = vsel %vm452, %v451, 0.0
      %457 = vst [vmem:[#allocation2 + $0x60] sm:$0xff] %v453
      %458 = vst [vmem:[#allocation2 + $0x68] sm:$0xff] %v456
      %459 = vrot.lane.b32.xlu0 %v396, 96
      %v460 = vpop.permute.xlu0 %459
      %461 = vrot.lane.b32.xlu0 %v398, 96
      %v462 = vpop.permute.xlu0 %461
      %vm463 = vcmask 785408
      %v464 = vsel %vm463, %v460, %v462
      %v467 = vsel %vm463, %v462, 0.0
      %468 = vst [vmem:[#allocation2 + $0x70] sm:$0xff] %v464
      %469 = vst [vmem:[#allocation2 + $0x78] sm:$0xff] %v467
      %470 = vrot.lane.b32.xlu0 %v396, 80
      %v471 = vpop.permute.xlu0 %470
      %472 = vrot.lane.b32.xlu0 %v398, 80
      %v473 = vpop.permute.xlu0 %472
      %v474 = vsel %vm325, %v471, %v473
      %v477 = vsel %vm325, %v473, 0.0
      %478 = vst [vmem:[#allocation2 + $0x80] sm:$0xff] %v474
      %479 = vst [vmem:[#allocation2 + $0x88] sm:$0xff] %v477
      %v481 = vsel %vm406, %v405, 0.0
      %482 = vst [vmem:[#allocation2 + $0x90] sm:$0xff] %v407
      %483 = vst [vmem:[#allocation2 + $0x98] sm:$0xff] %v481
      %s484 = scalar_lea.vmem %s1, 8
      %v485 = vld [vmem:[%s484] sm:$0xff]
      %v486 = vld [vmem:[#allocation2] sm:$0xff]
      %v487 = vld [vmem:[#allocation2 + $0x8] sm:$0xff]
      %v488 = vld [vmem:[#allocation2 + $0x10] sm:$0xff]
      %v489 = vld [vmem:[#allocation2 + $0x18] sm:$0xff]
      %v490 = vld [vmem:[#allocation2 + $0x20] sm:$0xff]
      %v491 = vld [vmem:[#allocation2 + $0x28] sm:$0xff]
      %v492 = vld [vmem:[#allocation2 + $0x30] sm:$0xff]
      %v493 = vld [vmem:[#allocation2 + $0x38] sm:$0xff]
      %v494 = vld [vmem:[#allocation2 + $0x40] sm:$0xff]
      %v495 = vld [vmem:[#allocation2 + $0x48] sm:$0xff]
      %v496 = vld [vmem:[#allocation2 + $0x50] sm:$0xff]
      %v497 = vld [vmem:[#allocation2 + $0x58] sm:$0xff]
      %v498 = vld [vmem:[#allocation2 + $0x60] sm:$0xff]
      %v499 = vld [vmem:[#allocation2 + $0x68] sm:$0xff]
      %v500 = vld [vmem:[#allocation2 + $0x70] sm:$0xff]
      %v501 = vld [vmem:[#allocation2 + $0x78] sm:$0xff]
      %v502 = vld [vmem:[#allocation2 + $0x80] sm:$0xff]
      %v503 = vld [vmem:[#allocation2 + $0x88] sm:$0xff]
      %v504 = vld [vmem:[#allocation2 + $0x90] sm:$0xff]
      %v505 = vld [vmem:[#allocation2 + $0x98] sm:$0xff]
      %v507 = vsel %vm325, %v485, 0
      %509 = vmatprep.subr.mxu0 %v487
      %510 = vmatpush1.msra.mxu0 %v486
      %511 = vmatprep.subr.mxu0 %v489
      %512 = vmatpush1.msra.mxu0 %v488
      %513 = vmatprep.subr.mxu0 %v491
      %514 = vmatpush1.msra.mxu0 %v490
      %515 = vmatprep.subr.mxu0 %v493
      %516 = vmatpush1.msra.mxu0 %v492
      %517 = vmatprep.subr.mxu0 %v495
      %518 = vmatpush1.msra.mxu0 %v494
      %519 = vmatprep.subr.mxu0 %v497
      %520 = vmatpush1.msra.mxu0 %v496
      %521 = vmatprep.subr.mxu0 %v499
      %522 = vmatpush1.msra.mxu0 %v498
      %523 = vmatprep.subr.mxu0 %v501
      %524 = vmatpush1.msra.mxu0 %v500
      %525 = vmatprep.subr.mxu0 %v503
      %526 = vmatpush1.msra.mxu0 %v502
      %527 = vmatprep.subr.mxu0 %v505
      %528 = vmatpush1.msra.mxu0 %v504
      %529 = vmatprep.subr.mxu0 0.0
      %530 = vmatpush1.msra.mxu0 0.0
      %531 = vmatprep.subr.mxu0 0.0
      %532 = vmatpush1.msra.mxu0 0.0
      %533 = vmatprep.subr.mxu0 0.0
      %534 = vmatpush1.msra.mxu0 0.0
      %535 = vmatprep.subr.mxu0 0.0
      %536 = vmatpush1.msra.mxu0 0.0
      %537 = vmatprep.subr.mxu0 0.0
      %538 = vmatpush1.msra.mxu0 0.0
      %539 = vmatprep.subr.mxu0 0.0
      %540 = vmatpush1.msra.mxu0 0.0
      %541 = vmatprep.subr.mxu0 0.0
      %542 = vmatpush1.msra.mxu0 0.0
      %543 = vmatprep.subr.mxu0 0.0
      %544 = vmatpush1.msra.mxu0 0.0
      %545 = vmatprep.subr.mxu0 0.0
      %546 = vmatpush1.msra.mxu0 0.0
      %547 = vmatprep.subr.mxu0 0.0
      %548 = vmatpush1.msra.mxu0 0.0
      %549 = vmatprep.subr.mxu0 0.0
      %550 = vmatpush1.msra.mxu0 0.0
      %551 = vmatprep.subr.mxu0 0.0
      %552 = vmatpush1.msra.mxu0 0.0
      %553 = vmatprep.subr.mxu0 0.0
      %554 = vmatpush1.msra.mxu0 0.0
      %555 = vmatprep.subr.mxu0 0.0
      %556 = vmatpush1.msra.mxu0 0.0
      %557 = vmatprep.subr.mxu0 0.0
      %558 = vmatpush1.msra.mxu0 0.0
      %559 = vmatprep.subr.mxu0 0.0
      %560 = vmatpush1.msra.mxu0 0.0
      %561 = vmatprep.subr.mxu0 0.0
      %562 = vmatpush1.msra.mxu0 0.0
      %563 = vmatprep.subr.mxu0 0.0
      %564 = vmatpush1.msra.mxu0 0.0
      %565 = vmatprep.subr.mxu0 0.0
      %566 = vmatpush1.msra.mxu0 0.0
      %567 = vmatprep.subr.mxu0 0.0
      %568 = vmatpush1.msra.mxu0 0.0
      %569 = vmatprep.subr.mxu0 0.0
      %570 = vmatpush1.msra.mxu0 0.0
      %571 = vmatprep.subr.mxu0 0.0
      %572 = vmatpush1.msra.mxu0 0.0
      %573 = vmatprep.mubr.f32.mxu0 0.0
      %574 = vmatmul.mubr.f32.gmra.mrb[0].mxu0 %v507
      %v575 = vpop.f32.mrb[0].mxu0
      %v576 = vadd.f32 0.0, %v575
      %v577 = vpop.f32.mrb[0].mxu0
      %v578 = vadd.f32 0.0, %v577
      %579 = vdwg.mxu0
      %582 = vrot.lane.b32.xlu0 %v576, 4
      %v583 = vpop.permute.xlu0 %582
      %584 = vrot.lane.b32.xlu0 %v578, 4
      %v585 = vpop.permute.xlu0 %584
      %vm586 = vcmask 31744
      %v587 = vsel %vm586, %v583, %v585
      %v590 = vsel %vm586, 0.0, %v583
      %v591 = vmul.f32 %v590, %v159
      %v592 = vmul.f32 %v587, %v160
      %593 = vst [vmem:[#allocation2 + $0x10] sm:$0xff] %v591
      %594 = vst [vmem:[#allocation2 + $0x18] sm:$0xff] %v592
      %595 = vrot.lane.b32.xlu0 %v576, 3
      %v596 = vpop.permute.xlu0 %595
      %597 = vrot.lane.b32.xlu0 %v578, 3
      %v598 = vpop.permute.xlu0 %597
      %vm599 = vcmask 23552
      %v600 = vsel %vm599, %v596, %v598
      %v603 = vsel %vm599, 0.0, %v596
      %v604 = vmul.f32 %v603, %v171
      %v605 = vmul.f32 %v600, %v172
      %606 = vst [vmem:[#allocation2 + $0x20] sm:$0xff] %v604
      %607 = vst [vmem:[#allocation2 + $0x28] sm:$0xff] %v605
      %608 = vrot.lane.b32.xlu0 %v576, 2
      %v609 = vpop.permute.xlu0 %608
      %610 = vrot.lane.b32.xlu0 %v578, 2
      %v611 = vpop.permute.xlu0 %610
      %vm612 = vcmask 15360
      %v613 = vsel %vm612, %v609, %v611
      %v616 = vsel %vm612, 0.0, %v609
      %v617 = vmul.f32 %v616, %v183
      %v618 = vmul.f32 %v613, %v184
      %619 = vst [vmem:[#allocation2 + $0x30] sm:$0xff] %v617
      %620 = vst [vmem:[#allocation2 + $0x38] sm:$0xff] %v618
      %621 = vrot.lane.b32.xlu0 %v576, 1
      %v622 = vpop.permute.xlu0 %621
      %623 = vrot.lane.b32.xlu0 %v578, 1
      %v624 = vpop.permute.xlu0 %623
      %v625 = vsel %vm278, %v622, %v624
      %v628 = vsel %vm278, 0.0, %v622
      %v629 = vmul.f32 %v628, %v195
      %v630 = vmul.f32 %v625, %v196
      %631 = vst [vmem:[#allocation2 + $0x40] sm:$0xff] %v629
      %632 = vst [vmem:[#allocation2 + $0x48] sm:$0xff] %v630
      %633 = vst [vmem:[#allocation2 + $0x50] sm:$0xff] %v576
      %634 = vst [vmem:[#allocation2 + $0x58] sm:$0xff] %v578
      %635 = vrot.lane.b32.xlu0 %v576, 127
      %v636 = vpop.permute.xlu0 %635
      %637 = vrot.lane.b32.xlu0 %v578, 127
      %v638 = vpop.permute.xlu0 %637
      %v639 = vsel %vm295, %v636, %v638
      %v642 = vsel %vm295, %v638, 0.0
      %v643 = vmul.f32 %v639, %v207
      %v644 = vmul.f32 %v642, %v208
      %645 = vst [vmem:[#allocation2 + $0x60] sm:$0xff] %v643
      %646 = vst [vmem:[#allocation2 + $0x68] sm:$0xff] %v644
      %647 = vrot.lane.b32.xlu0 %v576, 126
      %v648 = vpop.permute.xlu0 %647
      %649 = vrot.lane.b32.xlu0 %v578, 126
      %v650 = vpop.permute.xlu0 %649
      %vm651 = vcmask 1031168
      %v652 = vsel %vm651, %v648, %v650
      %v655 = vsel %vm651, %v650, 0.0
      %v656 = vmul.f32 %v652, %v219
      %v657 = vmul.f32 %v655, %v220
      %658 = vst [vmem:[#allocation2 + $0x70] sm:$0xff] %v656
      %659 = vst [vmem:[#allocation2 + $0x78] sm:$0xff] %v657
      %660 = vrot.lane.b32.xlu0 %v576, 125
      %v661 = vpop.permute.xlu0 %660
      %662 = vrot.lane.b32.xlu0 %v578, 125
      %v663 = vpop.permute.xlu0 %662
      %vm664 = vcmask 1022976
      %v665 = vsel %vm664, %v661, %v663
      %v668 = vsel %vm664, %v663, 0.0
      %v669 = vmul.f32 %v665, %v231
      %v670 = vmul.f32 %v668, %v232
      %671 = vst [vmem:[#allocation2 + $0x80] sm:$0xff] %v669
      %672 = vst [vmem:[#allocation2 + $0x88] sm:$0xff] %v670
      %673 = vrot.lane.b32.xlu0 %v576, 124
      %v674 = vpop.permute.xlu0 %673
      %675 = vrot.lane.b32.xlu0 %v578, 124
      %v676 = vpop.permute.xlu0 %675
      %vm677 = vcmask 1014784
      %v678 = vsel %vm677, %v674, %v676
      %v681 = vsel %vm677, %v676, 0.0
      %v682 = vmul.f32 %v678, %v243
      %v683 = vmul.f32 %v681, %v244
      %684 = vst [vmem:[#allocation2 + $0x90] sm:$0xff] %v682
      %685 = vst [vmem:[#allocation2 + $0x98] sm:$0xff] %v683
      %s686 = scalar_lea.vmem %s1, 16
      %v687 = vld [vmem:[%s686] sm:$0xff]
      %v688 = vld [vmem:[#allocation2] sm:$0xff]
      %v689 = vld [vmem:[#allocation2 + $0x8] sm:$0xff]
      %v690 = vld [vmem:[#allocation2 + $0x10] sm:$0xff]
      %v691 = vld [vmem:[#allocation2 + $0x18] sm:$0xff]
      %v692 = vld [vmem:[#allocation2 + $0x20] sm:$0xff]
      %v693 = vld [vmem:[#allocation2 + $0x28] sm:$0xff]
      %v694 = vld [vmem:[#allocation2 + $0x30] sm:$0xff]
      %v695 = vld [vmem:[#allocation2 + $0x38] sm:$0xff]
      %v696 = vld [vmem:[#allocation2 + $0x40] sm:$0xff]
      %v697 = vld [vmem:[#allocation2 + $0x48] sm:$0xff]
      %v698 = vld [vmem:[#allocation2 + $0x50] sm:$0xff]
      %v699 = vld [vmem:[#allocation2 + $0x58] sm:$0xff]
      %v700 = vld [vmem:[#allocation2 + $0x60] sm:$0xff]
      %v701 = vld [vmem:[#allocation2 + $0x68] sm:$0xff]
      %v702 = vld [vmem:[#allocation2 + $0x70] sm:$0xff]
      %v703 = vld [vmem:[#allocation2 + $0x78] sm:$0xff]
      %v704 = vld [vmem:[#allocation2 + $0x80] sm:$0xff]
      %v705 = vld [vmem:[#allocation2 + $0x88] sm:$0xff]
      %v706 = vld [vmem:[#allocation2 + $0x90] sm:$0xff]
      %v707 = vld [vmem:[#allocation2 + $0x98] sm:$0xff]
      %v709 = vsel %vm325, %v687, 0
      %711 = vmatprep.subr.mxu0 %v689
      %712 = vmatpush1.msra.mxu0 %v688
      %713 = vmatprep.subr.mxu0 %v691
      %714 = vmatpush1.msra.mxu0 %v690
      %715 = vmatprep.subr.mxu0 %v693
      %716 = vmatpush1.msra.mxu0 %v692
      %717 = vmatprep.subr.mxu0 %v695
      %718 = vmatpush1.msra.mxu0 %v694
      %719 = vmatprep.subr.mxu0 %v697
      %720 = vmatpush1.msra.mxu0 %v696
      %721 = vmatprep.subr.mxu0 %v699
      %722 = vmatpush1.msra.mxu0 %v698
      %723 = vmatprep.subr.mxu0 %v701
      %724 = vmatpush1.msra.mxu0 %v700
      %725 = vmatprep.subr.mxu0 %v703
      %726 = vmatpush1.msra.mxu0 %v702
      %727 = vmatprep.subr.mxu0 %v705
      %728 = vmatpush1.msra.mxu0 %v704
      %729 = vmatprep.subr.mxu0 %v707
      %730 = vmatpush1.msra.mxu0 %v706
      %731 = vmatprep.subr.mxu0 0.0
      %732 = vmatpush1.msra.mxu0 0.0
      %733 = vmatprep.subr.mxu0 0.0
      %734 = vmatpush1.msra.mxu0 0.0
      %735 = vmatprep.subr.mxu0 0.0
      %736 = vmatpush1.msra.mxu0 0.0
      %737 = vmatprep.subr.mxu0 0.0
      %738 = vmatpush1.msra.mxu0 0.0
      %739 = vmatprep.subr.mxu0 0.0
      %740 = vmatpush1.msra.mxu0 0.0
      %741 = vmatprep.subr.mxu0 0.0
      %742 = vmatpush1.msra.mxu0 0.0
      %743 = vmatprep.subr.mxu0 0.0
      %744 = vmatpush1.msra.mxu0 0.0
      %745 = vmatprep.subr.mxu0 0.0
      %746 = vmatpush1.msra.mxu0 0.0
      %747 = vmatprep.subr.mxu0 0.0
      %748 = vmatpush1.msra.mxu0 0.0
      %749 = vmatprep.subr.mxu0 0.0
      %750 = vmatpush1.msra.mxu0 0.0
      %751 = vmatprep.subr.mxu0 0.0
      %752 = vmatpush1.msra.mxu0 0.0
      %753 = vmatprep.subr.mxu0 0.0
      %754 = vmatpush1.msra.mxu0 0.0
      %755 = vmatprep.subr.mxu0 0.0
      %756 = vmatpush1.msra.mxu0 0.0
      %757 = vmatprep.subr.mxu0 0.0
      %758 = vmatpush1.msra.mxu0 0.0
      %759 = vmatprep.subr.mxu0 0.0
      %760 = vmatpush1.msra.mxu0 0.0
      %761 = vmatprep.subr.mxu0 0.0
      %762 = vmatpush1.msra.mxu0 0.0
      %763 = vmatprep.subr.mxu0 0.0
      %764 = vmatpush1.msra.mxu0 0.0
      %765 = vmatprep.subr.mxu0 0.0
      %766 = vmatpush1.msra.mxu0 0.0
      %767 = vmatprep.subr.mxu0 0.0
      %768 = vmatpush1.msra.mxu0 0.0
      %769 = vmatprep.subr.mxu0 0.0
      %770 = vmatpush1.msra.mxu0 0.0
      %771 = vmatprep.subr.mxu0 0.0
      %772 = vmatpush1.msra.mxu0 0.0
      %773 = vmatprep.subr.mxu0 0.0
      %774 = vmatpush1.msra.mxu0 0.0
      %775 = vmatprep.mubr.f32.mxu0 0.0
      %776 = vmatmul.mubr.f32.gmra.mrb[0].mxu0 %v709
      %v777 = vpop.f32.mrb[0].mxu0
      %v778 = vadd.f32 0.0, %v777
      %v779 = vpop.f32.mrb[0].mxu0
      %v780 = vadd.f32 0.0, %v779
      %781 = vdwg.mxu0
      %784 = vrot.lane.b32.xlu0 %v778, 16
      %v785 = vpop.permute.xlu0 %784
      %786 = vrot.lane.b32.xlu0 %v780, 16
      %v787 = vpop.permute.xlu0 %786
      %v788 = vsel %vm439, %v785, %v787
      %v791 = vsel %vm439, 0.0, %v785
      %792 = vst [vmem:[#allocation2 + $0x10] sm:$0xff] %v791
      %793 = vst [vmem:[#allocation2 + $0x18] sm:$0xff] %v788
      %794 = vst [vmem:[#allocation2 + $0x20] sm:$0xff] %v778
      %795 = vst [vmem:[#allocation2 + $0x28] sm:$0xff] %v780
      %796 = vrot.lane.b32.xlu0 %v778, 112
      %v797 = vpop.permute.xlu0 %796
      %798 = vrot.lane.b32.xlu0 %v780, 112
      %v799 = vpop.permute.xlu0 %798
      %v800 = vsel %vm452, %v797, %v799
      %v803 = vsel %vm452, %v799, 0.0
      %804 = vst [vmem:[#allocation2 + $0x30] sm:$0xff] %v800
      %805 = vst [vmem:[#allocation2 + $0x38] sm:$0xff] %v803
      %s806 = scalar_lea.vmem %s1, 24
      %v807 = vld [vmem:[%s806] sm:$0xff]
      %v808 = vld [vmem:[#allocation2] sm:$0xff]
      %v809 = vld [vmem:[#allocation2 + $0x8] sm:$0xff]
      %v810 = vld [vmem:[#allocation2 + $0x10] sm:$0xff]
      %v811 = vld [vmem:[#allocation2 + $0x18] sm:$0xff]
      %v812 = vld [vmem:[#allocation2 + $0x20] sm:$0xff]
      %v813 = vld [vmem:[#allocation2 + $0x28] sm:$0xff]
      %v814 = vld [vmem:[#allocation2 + $0x30] sm:$0xff]
      %v815 = vld [vmem:[#allocation2 + $0x38] sm:$0xff]
      %v816 = vld [vmem:[#allocation2 + $0x40] sm:$0xff]
      %v817 = vld [vmem:[#allocation2 + $0x48] sm:$0xff]
      %v818 = vld [vmem:[#allocation2 + $0x50] sm:$0xff]
      %v819 = vld [vmem:[#allocation2 + $0x58] sm:$0xff]
      %v820 = vld [vmem:[#allocation2 + $0x60] sm:$0xff]
      %v821 = vld [vmem:[#allocation2 + $0x68] sm:$0xff]
      %v822 = vld [vmem:[#allocation2 + $0x70] sm:$0xff]
      %v823 = vld [vmem:[#allocation2 + $0x78] sm:$0xff]
      %v824 = vld [vmem:[#allocation2 + $0x80] sm:$0xff]
      %v825 = vld [vmem:[#allocation2 + $0x88] sm:$0xff]
      %v826 = vld [vmem:[#allocation2 + $0x90] sm:$0xff]
      %v827 = vld [vmem:[#allocation2 + $0x98] sm:$0xff]
      %v829 = vsel %vm325, %v807, 0
      %831 = vmatprep.subr.mxu0 %v809
      %832 = vmatpush1.msra.mxu0 %v808
      %833 = vmatprep.subr.mxu0 %v811
      %834 = vmatpush1.msra.mxu0 %v810
      %835 = vmatprep.subr.mxu0 %v813
      %836 = vmatpush1.msra.mxu0 %v812
      %837 = vmatprep.subr.mxu0 %v815
      %838 = vmatpush1.msra.mxu0 %v814
      %839 = vmatprep.subr.mxu0 %v817
      %840 = vmatpush1.msra.mxu0 %v816
      %841 = vmatprep.subr.mxu0 %v819
      %842 = vmatpush1.msra.mxu0 %v818
      %843 = vmatprep.subr.mxu0 %v821
      %844 = vmatpush1.msra.mxu0 %v820
      %845 = vmatprep.subr.mxu0 %v823
      %846 = vmatpush1.msra.mxu0 %v822
      %847 = vmatprep.subr.mxu0 %v825
      %848 = vmatpush1.msra.mxu0 %v824
      %849 = vmatprep.subr.mxu0 %v827
      %850 = vmatpush1.msra.mxu0 %v826
      %851 = vmatprep.subr.mxu0 0.0
      %852 = vmatpush1.msra.mxu0 0.0
      %853 = vmatprep.subr.mxu0 0.0
      %854 = vmatpush1.msra.mxu0 0.0
      %855 = vmatprep.subr.mxu0 0.0
      %856 = vmatpush1.msra.mxu0 0.0
      %857 = vmatprep.subr.mxu0 0.0
      %858 = vmatpush1.msra.mxu0 0.0
      %859 = vmatprep.subr.mxu0 0.0
      %860 = vmatpush1.msra.mxu0 0.0
      %861 = vmatprep.subr.mxu0 0.0
      %862 = vmatpush1.msra.mxu0 0.0
      %863 = vmatprep.subr.mxu0 0.0
      %864 = vmatpush1.msra.mxu0 0.0
      %865 = vmatprep.subr.mxu0 0.0
      %866 = vmatpush1.msra.mxu0 0.0
      %867 = vmatprep.subr.mxu0 0.0
      %868 = vmatpush1.msra.mxu0 0.0
      %869 = vmatprep.subr.mxu0 0.0
      %870 = vmatpush1.msra.mxu0 0.0
      %871 = vmatprep.subr.mxu0 0.0
      %872 = vmatpush1.msra.mxu0 0.0
      %873 = vmatprep.subr.mxu0 0.0
      %874 = vmatpush1.msra.mxu0 0.0
      %875 = vmatprep.subr.mxu0 0.0
      %876 = vmatpush1.msra.mxu0 0.0
      %877 = vmatprep.subr.mxu0 0.0
      %878 = vmatpush1.msra.mxu0 0.0
      %879 = vmatprep.subr.mxu0 0.0
      %880 = vmatpush1.msra.mxu0 0.0
      %881 = vmatprep.subr.mxu0 0.0
      %882 = vmatpush1.msra.mxu0 0.0
      %883 = vmatprep.subr.mxu0 0.0
      %884 = vmatpush1.msra.mxu0 0.0
      %885 = vmatprep.subr.mxu0 0.0
      %886 = vmatpush1.msra.mxu0 0.0
      %887 = vmatprep.subr.mxu0 0.0
      %888 = vmatpush1.msra.mxu0 0.0
      %889 = vmatprep.subr.mxu0 0.0
      %890 = vmatpush1.msra.mxu0 0.0
      %891 = vmatprep.subr.mxu0 0.0
      %892 = vmatpush1.msra.mxu0 0.0
      %893 = vmatprep.subr.mxu0 0.0
      %894 = vmatpush1.msra.mxu0 0.0
      %895 = vmatprep.mubr.f32.mxu0 0.0
      %896 = vmatmul.mubr.f32.gmra.mrb[0].mxu0 %v829
      %v897 = vpop.f32.mrb[0].mxu0
      %v898 = vadd.f32 0.0, %v897
      %v899 = vpop.f32.mrb[0].mxu0
      %v900 = vadd.f32 0.0, %v899
      %901 = vdwg.mxu0
      %904 = vrot.lane.b32.xlu0 %v898, 1
      %v905 = vpop.permute.xlu0 %904
      %906 = vrot.lane.b32.xlu0 %v900, 1
      %v907 = vpop.permute.xlu0 %906
      %v908 = vsel %vm278, %v905, %v907
      %v911 = vsel %vm278, 0.0, %v905
      %v912 = vmul.f32 %v911, %v195
      %v913 = vmul.f32 %v908, %v196
      %914 = vst [vmem:[#allocation2 + $0x10] sm:$0xff] %v912
      %915 = vst [vmem:[#allocation2 + $0x18] sm:$0xff] %v913
      %916 = vst [vmem:[#allocation2 + $0x20] sm:$0xff] %v898
      %917 = vst [vmem:[#allocation2 + $0x28] sm:$0xff] %v900
      %918 = vrot.lane.b32.xlu0 %v898, 127
      %v919 = vpop.permute.xlu0 %918
      %920 = vrot.lane.b32.xlu0 %v900, 127
      %v921 = vpop.permute.xlu0 %920
      %v922 = vsel %vm295, %v919, %v921
      %v925 = vsel %vm295, %v921, 0.0
      %v926 = vmul.f32 %v922, %v207
      %v927 = vmul.f32 %v925, %v208
      %928 = vst [vmem:[#allocation2 + $0x30] sm:$0xff] %v926
      %929 = vst [vmem:[#allocation2 + $0x38] sm:$0xff] %v927
      %s930 = scalar_lea.vmem %s1, 32
      %v931 = vld [vmem:[%s930] sm:$0xff]
      %v932 = vld [vmem:[#allocation2] sm:$0xff]
      %v933 = vld [vmem:[#allocation2 + $0x8] sm:$0xff]
      %v934 = vld [vmem:[#allocation2 + $0x10] sm:$0xff]
      %v935 = vld [vmem:[#allocation2 + $0x18] sm:$0xff]
      %v936 = vld [vmem:[#allocation2 + $0x20] sm:$0xff]
      %v937 = vld [vmem:[#allocation2 + $0x28] sm:$0xff]
      %v938 = vld [vmem:[#allocation2 + $0x30] sm:$0xff]
      %v939 = vld [vmem:[#allocation2 + $0x38] sm:$0xff]
      %v940 = vld [vmem:[#allocation2 + $0x40] sm:$0xff]
      %v941 = vld [vmem:[#allocation2 + $0x48] sm:$0xff]
      %v942 = vld [vmem:[#allocation2 + $0x50] sm:$0xff]
      %v943 = vld [vmem:[#allocation2 + $0x58] sm:$0xff]
      %v944 = vld [vmem:[#allocation2 + $0x60] sm:$0xff]
      %v945 = vld [vmem:[#allocation2 + $0x68] sm:$0xff]
      %v946 = vld [vmem:[#allocation2 + $0x70] sm:$0xff]
      %v947 = vld [vmem:[#allocation2 + $0x78] sm:$0xff]
      %v948 = vld [vmem:[#allocation2 + $0x80] sm:$0xff]
      %v949 = vld [vmem:[#allocation2 + $0x88] sm:$0xff]
      %v950 = vld [vmem:[#allocation2 + $0x90] sm:$0xff]
      %v951 = vld [vmem:[#allocation2 + $0x98] sm:$0xff]
      %v953 = vsel %vm325, %v931, 0
      %955 = vmatprep.subr.mxu0 %v933
      %956 = vmatpush1.msra.mxu0 %v932
      %957 = vmatprep.subr.mxu0 %v935
      %958 = vmatpush1.msra.mxu0 %v934
      %959 = vmatprep.subr.mxu0 %v937
      %960 = vmatpush1.msra.mxu0 %v936
      %961 = vmatprep.subr.mxu0 %v939
      %962 = vmatpush1.msra.mxu0 %v938
      %963 = vmatprep.subr.mxu0 %v941
      %964 = vmatpush1.msra.mxu0 %v940
      %965 = vmatprep.subr.mxu0 %v943
      %966 = vmatpush1.msra.mxu0 %v942
      %967 = vmatprep.subr.mxu0 %v945
      %968 = vmatpush1.msra.mxu0 %v944
      %969 = vmatprep.subr.mxu0 %v947
      %970 = vmatpush1.msra.mxu0 %v946
      %971 = vmatprep.subr.mxu0 %v949
      %972 = vmatpush1.msra.mxu0 %v948
      %973 = vmatprep.subr.mxu0 %v951
      %974 = vmatpush1.msra.mxu0 %v950
      %975 = vmatprep.subr.mxu0 0.0
      %976 = vmatpush1.msra.mxu0 0.0
      %977 = vmatprep.subr.mxu0 0.0
      %978 = vmatpush1.msra.mxu0 0.0
      %979 = vmatprep.subr.mxu0 0.0
      %980 = vmatpush1.msra.mxu0 0.0
      %981 = vmatprep.subr.mxu0 0.0
      %982 = vmatpush1.msra.mxu0 0.0
      %983 = vmatprep.subr.mxu0 0.0
      %984 = vmatpush1.msra.mxu0 0.0
      %985 = vmatprep.subr.mxu0 0.0
      %986 = vmatpush1.msra.mxu0 0.0
      %987 = vmatprep.subr.mxu0 0.0
      %988 = vmatpush1.msra.mxu0 0.0
      %989 = vmatprep.subr.mxu0 0.0
      %990 = vmatpush1.msra.mxu0 0.0
      %991 = vmatprep.subr.mxu0 0.0
      %992 = vmatpush1.msra.mxu0 0.0
      %993 = vmatprep.subr.mxu0 0.0
      %994 = vmatpush1.msra.mxu0 0.0
      %995 = vmatprep.subr.mxu0 0.0
      %996 = vmatpush1.msra.mxu0 0.0
      %997 = vmatprep.subr.mxu0 0.0
      %998 = vmatpush1.msra.mxu0 0.0
      %999 = vmatprep.subr.mxu0 0.0
      %1000 = vmatpush1.msra.mxu0 0.0
      %1001 = vmatprep.subr.mxu0 0.0
      %1002 = vmatpush1.msra.mxu0 0.0
      %1003 = vmatprep.subr.mxu0 0.0
      %1004 = vmatpush1.msra.mxu0 0.0
      %1005 = vmatprep.subr.mxu0 0.0
      %1006 = vmatpush1.msra.mxu0 0.0
      %1007 = vmatprep.subr.mxu0 0.0
      %1008 = vmatpush1.msra.mxu0 0.0
      %1009 = vmatprep.subr.mxu0 0.0
      %1010 = vmatpush1.msra.mxu0 0.0
      %1011 = vmatprep.subr.mxu0 0.0
      %1012 = vmatpush1.msra.mxu0 0.0
      %1013 = vmatprep.subr.mxu0 0.0
      %1014 = vmatpush1.msra.mxu0 0.0
      %1015 = vmatprep.subr.mxu0 0.0
      %1016 = vmatpush1.msra.mxu0 0.0
      %1017 = vmatprep.subr.mxu0 0.0
      %1018 = vmatpush1.msra.mxu0 0.0
      %1019 = vmatprep.mubr.f32.mxu0 0.0
      %1020 = vmatmul.mubr.f32.gmra.mrb[0].mxu0 %v953
      %v1021 = vpop.f32.mrb[0].mxu0
      %v1022 = vadd.f32 0.0, %v1021
      %v1023 = vpop.f32.mrb[0].mxu0
      %v1024 = vadd.f32 0.0, %v1023
      %1025 = vdwg.mxu0
      %1028 = vrot.lane.b32.xlu0 %v1022, 16
      %v1029 = vpop.permute.xlu0 %1028
      %1030 = vrot.lane.b32.xlu0 %v1024, 16
      %v1031 = vpop.permute.xlu0 %1030
      %v1032 = vsel %vm439, %v1029, %v1031
      %v1035 = vsel %vm439, 0.0, %v1029
      %1036 = vst [vmem:[#allocation2 + $0x10] sm:$0xff] %v1035
      %1037 = vst [vmem:[#allocation2 + $0x18] sm:$0xff] %v1032
      %1038 = vst [vmem:[#allocation2 + $0x20] sm:$0xff] %v1022
      %1039 = vst [vmem:[#allocation2 + $0x28] sm:$0xff] %v1024
      %1040 = vrot.lane.b32.xlu0 %v1022, 112
      %v1041 = vpop.permute.xlu0 %1040
      %1042 = vrot.lane.b32.xlu0 %v1024, 112
      %v1043 = vpop.permute.xlu0 %1042
      %v1044 = vsel %vm452, %v1041, %v1043
      %v1047 = vsel %vm452, %v1043, 0.0
      %1048 = vst [vmem:[#allocation2 + $0x30] sm:$0xff] %v1044
      %1049 = vst [vmem:[#allocation2 + $0x38] sm:$0xff] %v1047
      %s1050 = scalar_lea.vmem %s1, 40
      %v1051 = vld [vmem:[%s1050] sm:$0xff]
      %v1052 = vld [vmem:[#allocation2] sm:$0xff]
      %v1053 = vld [vmem:[#allocation2 + $0x8] sm:$0xff]
      %v1054 = vld [vmem:[#allocation2 + $0x10] sm:$0xff]
      %v1055 = vld [vmem:[#allocation2 + $0x18] sm:$0xff]
      %v1056 = vld [vmem:[#allocation2 + $0x20] sm:$0xff]
      %v1057 = vld [vmem:[#allocation2 + $0x28] sm:$0xff]
      %v1058 = vld [vmem:[#allocation2 + $0x30] sm:$0xff]
      %v1059 = vld [vmem:[#allocation2 + $0x38] sm:$0xff]
      %v1060 = vld [vmem:[#allocation2 + $0x40] sm:$0xff]
      %v1061 = vld [vmem:[#allocation2 + $0x48] sm:$0xff]
      %v1062 = vld [vmem:[#allocation2 + $0x50] sm:$0xff]
      %v1063 = vld [vmem:[#allocation2 + $0x58] sm:$0xff]
      %v1064 = vld [vmem:[#allocation2 + $0x60] sm:$0xff]
      %v1065 = vld [vmem:[#allocation2 + $0x68] sm:$0xff]
      %v1066 = vld [vmem:[#allocation2 + $0x70] sm:$0xff]
      %v1067 = vld [vmem:[#allocation2 + $0x78] sm:$0xff]
      %v1068 = vld [vmem:[#allocation2 + $0x80] sm:$0xff]
      %v1069 = vld [vmem:[#allocation2 + $0x88] sm:$0xff]
      %v1070 = vld [vmem:[#allocation2 + $0x90] sm:$0xff]
      %v1071 = vld [vmem:[#allocation2 + $0x98] sm:$0xff]
      %v1073 = vsel %vm325, %v1051, 0
      %1075 = vmatprep.subr.mxu0 %v1053
      %1076 = vmatpush1.msra.mxu0 %v1052
      %1077 = vmatprep.subr.mxu0 %v1055
      %1078 = vmatpush1.msra.mxu0 %v1054
      %1079 = vmatprep.subr.mxu0 %v1057
      %1080 = vmatpush1.msra.mxu0 %v1056
      %1081 = vmatprep.subr.mxu0 %v1059
      %1082 = vmatpush1.msra.mxu0 %v1058
      %1083 = vmatprep.subr.mxu0 %v1061
      %1084 = vmatpush1.msra.mxu0 %v1060
      %1085 = vmatprep.subr.mxu0 %v1063
      %1086 = vmatpush1.msra.mxu0 %v1062
      %1087 = vmatprep.subr.mxu0 %v1065
      %1088 = vmatpush1.msra.mxu0 %v1064
      %1089 = vmatprep.subr.mxu0 %v1067
      %1090 = vmatpush1.msra.mxu0 %v1066
      %1091 = vmatprep.subr.mxu0 %v1069
      %1092 = vmatpush1.msra.mxu0 %v1068
      %1093 = vmatprep.subr.mxu0 %v1071
      %1094 = vmatpush1.msra.mxu0 %v1070
      %1095 = vmatprep.subr.mxu0 0.0
      %1096 = vmatpush1.msra.mxu0 0.0
      %1097 = vmatprep.subr.mxu0 0.0
      %1098 = vmatpush1.msra.mxu0 0.0
      %1099 = vmatprep.subr.mxu0 0.0
      %1100 = vmatpush1.msra.mxu0 0.0
      %1101 = vmatprep.subr.mxu0 0.0
      %1102 = vmatpush1.msra.mxu0 0.0
      %1103 = vmatprep.subr.mxu0 0.0
      %1104 = vmatpush1.msra.mxu0 0.0
      %1105 = vmatprep.subr.mxu0 0.0
      %1106 = vmatpush1.msra.mxu0 0.0
      %1107 = vmatprep.subr.mxu0 0.0
      %1108 = vmatpush1.msra.mxu0 0.0
      %1109 = vmatprep.subr.mxu0 0.0
      %1110 = vmatpush1.msra.mxu0 0.0
      %1111 = vmatprep.subr.mxu0 0.0
      %1112 = vmatpush1.msra.mxu0 0.0
      %1113 = vmatprep.subr.mxu0 0.0
      %1114 = vmatpush1.msra.mxu0 0.0
      %1115 = vmatprep.subr.mxu0 0.0
      %1116 = vmatpush1.msra.mxu0 0.0
      %1117 = vmatprep.subr.mxu0 0.0
      %1118 = vmatpush1.msra.mxu0 0.0
      %1119 = vmatprep.subr.mxu0 0.0
      %1120 = vmatpush1.msra.mxu0 0.0
      %1121 = vmatprep.subr.mxu0 0.0
      %1122 = vmatpush1.msra.mxu0 0.0
      %1123 = vmatprep.subr.mxu0 0.0
      %1124 = vmatpush1.msra.mxu0 0.0
      %1125 = vmatprep.subr.mxu0 0.0
      %1126 = vmatpush1.msra.mxu0 0.0
      %1127 = vmatprep.subr.mxu0 0.0
      %1128 = vmatpush1.msra.mxu0 0.0
      %1129 = vmatprep.subr.mxu0 0.0
      %1130 = vmatpush1.msra.mxu0 0.0
      %1131 = vmatprep.subr.mxu0 0.0
      %1132 = vmatpush1.msra.mxu0 0.0
      %1133 = vmatprep.subr.mxu0 0.0
      %1134 = vmatpush1.msra.mxu0 0.0
      %1135 = vmatprep.subr.mxu0 0.0
      %1136 = vmatpush1.msra.mxu0 0.0
      %1137 = vmatprep.subr.mxu0 0.0
      %1138 = vmatpush1.msra.mxu0 0.0
      %1139 = vmatprep.mubr.f32.mxu0 0.0
      %1140 = vmatmul.mubr.f32.gmra.mrb[0].mxu0 %v1073
      %v1141 = vpop.f32.mrb[0].mxu0
      %v1142 = vadd.f32 0.0, %v1141
      %v1143 = vpop.f32.mrb[0].mxu0
      %v1144 = vadd.f32 0.0, %v1143
      %1145 = vdwg.mxu0
      %1148 = vrot.lane.b32.xlu0 %v1142, 1
      %v1149 = vpop.permute.xlu0 %1148
      %1150 = vrot.lane.b32.xlu0 %v1144, 1
      %v1151 = vpop.permute.xlu0 %1150
      %v1152 = vsel %vm278, %v1149, %v1151
      %v1155 = vsel %vm278, 0.0, %v1149
      %v1156 = vmul.f32 %v1155, %v195
      %v1157 = vmul.f32 %v1152, %v196
      %1158 = vst [vmem:[#allocation2 + $0x10] sm:$0xff] %v1156
      %1159 = vst [vmem:[#allocation2 + $0x18] sm:$0xff] %v1157
      %1160 = vst [vmem:[#allocation2 + $0x20] sm:$0xff] %v1142
      %1161 = vst [vmem:[#allocation2 + $0x28] sm:$0xff] %v1144
      %1162 = vrot.lane.b32.xlu0 %v1142, 127
      %v1163 = vpop.permute.xlu0 %1162
      %1164 = vrot.lane.b32.xlu0 %v1144, 127
      %v1165 = vpop.permute.xlu0 %1164
      %v1166 = vsel %vm295, %v1163, %v1165
      %v1169 = vsel %vm295, %v1165, 0.0
      %v1170 = vmul.f32 %v1166, %v207
      %v1171 = vmul.f32 %v1169, %v208
      %1172 = vst [vmem:[#allocation2 + $0x30] sm:$0xff] %v1170
      %1173 = vst [vmem:[#allocation2 + $0x38] sm:$0xff] %v1171
      %s1174 = scalar_lea.vmem %s1, 48
      %v1175 = vld [vmem:[%s1174] sm:$0xff]
      %v1176 = vld [vmem:[#allocation2] sm:$0xff]
      %v1177 = vld [vmem:[#allocation2 + $0x8] sm:$0xff]
      %v1178 = vld [vmem:[#allocation2 + $0x10] sm:$0xff]
      %v1179 = vld [vmem:[#allocation2 + $0x18] sm:$0xff]
      %v1180 = vld [vmem:[#allocation2 + $0x20] sm:$0xff]
      %v1181 = vld [vmem:[#allocation2 + $0x28] sm:$0xff]
      %v1182 = vld [vmem:[#allocation2 + $0x30] sm:$0xff]
      %v1183 = vld [vmem:[#allocation2 + $0x38] sm:$0xff]
      %v1184 = vld [vmem:[#allocation2 + $0x40] sm:$0xff]
      %v1185 = vld [vmem:[#allocation2 + $0x48] sm:$0xff]
      %v1186 = vld [vmem:[#allocation2 + $0x50] sm:$0xff]
      %v1187 = vld [vmem:[#allocation2 + $0x58] sm:$0xff]
      %v1188 = vld [vmem:[#allocation2 + $0x60] sm:$0xff]
      %v1189 = vld [vmem:[#allocation2 + $0x68] sm:$0xff]
      %v1190 = vld [vmem:[#allocation2 + $0x70] sm:$0xff]
      %v1191 = vld [vmem:[#allocation2 + $0x78] sm:$0xff]
      %v1192 = vld [vmem:[#allocation2 + $0x80] sm:$0xff]
      %v1193 = vld [vmem:[#allocation2 + $0x88] sm:$0xff]
      %v1194 = vld [vmem:[#allocation2 + $0x90] sm:$0xff]
      %v1195 = vld [vmem:[#allocation2 + $0x98] sm:$0xff]
      %v1197 = vsel %vm325, %v1175, 0
      %1199 = vmatprep.subr.mxu0 %v1177
      %1200 = vmatpush1.msra.mxu0 %v1176
      %1201 = vmatprep.subr.mxu0 %v1179
      %1202 = vmatpush1.msra.mxu0 %v1178
      %1203 = vmatprep.subr.mxu0 %v1181
      %1204 = vmatpush1.msra.mxu0 %v1180
      %1205 = vmatprep.subr.mxu0 %v1183
      %1206 = vmatpush1.msra.mxu0 %v1182
      %1207 = vmatprep.subr.mxu0 %v1185
      %1208 = vmatpush1.msra.mxu0 %v1184
      %1209 = vmatprep.subr.mxu0 %v1187
      %1210 = vmatpush1.msra.mxu0 %v1186
      %1211 = vmatprep.subr.mxu0 %v1189
      %1212 = vmatpush1.msra.mxu0 %v1188
      %1213 = vmatprep.subr.mxu0 %v1191
      %1214 = vmatpush1.msra.mxu0 %v1190
      %1215 = vmatprep.subr.mxu0 %v1193
      %1216 = vmatpush1.msra.mxu0 %v1192
      %1217 = vmatprep.subr.mxu0 %v1195
      %1218 = vmatpush1.msra.mxu0 %v1194
      %1219 = vmatprep.subr.mxu0 0.0
      %1220 = vmatpush1.msra.mxu0 0.0
      %1221 = vmatprep.subr.mxu0 0.0
      %1222 = vmatpush1.msra.mxu0 0.0
      %1223 = vmatprep.subr.mxu0 0.0
      %1224 = vmatpush1.msra.mxu0 0.0
      %1225 = vmatprep.subr.mxu0 0.0
      %1226 = vmatpush1.msra.mxu0 0.0
      %1227 = vmatprep.subr.mxu0 0.0
      %1228 = vmatpush1.msra.mxu0 0.0
      %1229 = vmatprep.subr.mxu0 0.0
      %1230 = vmatpush1.msra.mxu0 0.0
      %1231 = vmatprep.subr.mxu0 0.0
      %1232 = vmatpush1.msra.mxu0 0.0
      %1233 = vmatprep.subr.mxu0 0.0
      %1234 = vmatpush1.msra.mxu0 0.0
      %1235 = vmatprep.subr.mxu0 0.0
      %1236 = vmatpush1.msra.mxu0 0.0
      %1237 = vmatprep.subr.mxu0 0.0
      %1238 = vmatpush1.msra.mxu0 0.0
      %1239 = vmatprep.subr.mxu0 0.0
      %1240 = vmatpush1.msra.mxu0 0.0
      %1241 = vmatprep.subr.mxu0 0.0
      %1242 = vmatpush1.msra.mxu0 0.0
      %1243 = vmatprep.subr.mxu0 0.0
      %1244 = vmatpush1.msra.mxu0 0.0
      %1245 = vmatprep.subr.mxu0 0.0
      %1246 = vmatpush1.msra.mxu0 0.0
      %1247 = vmatprep.subr.mxu0 0.0
      %1248 = vmatpush1.msra.mxu0 0.0
      %1249 = vmatprep.subr.mxu0 0.0
      %1250 = vmatpush1.msra.mxu0 0.0
      %1251 = vmatprep.subr.mxu0 0.0
      %1252 = vmatpush1.msra.mxu0 0.0
      %1253 = vmatprep.subr.mxu0 0.0
      %1254 = vmatpush1.msra.mxu0 0.0
      %1255 = vmatprep.subr.mxu0 0.0
      %1256 = vmatpush1.msra.mxu0 0.0
      %1257 = vmatprep.subr.mxu0 0.0
      %1258 = vmatpush1.msra.mxu0 0.0
      %1259 = vmatprep.subr.mxu0 0.0
      %1260 = vmatpush1.msra.mxu0 0.0
      %1261 = vmatprep.subr.mxu0 0.0
      %1262 = vmatpush1.msra.mxu0 0.0
      %1263 = vmatprep.mubr.f32.mxu0 0.0
      %1264 = vmatmul.mubr.f32.gmra.mrb[0].mxu0 %v1197
      %v1265 = vpop.f32.mrb[0].mxu0
      %v1266 = vadd.f32 0.0, %v1265
      %v1267 = vpop.f32.mrb[0].mxu0
      %v1268 = vadd.f32 0.0, %v1267
      %1269 = vdwg.mxu0
      %1272 = vrot.lane.b32.xlu0 %v1266, 16
      %v1273 = vpop.permute.xlu0 %1272
      %1274 = vrot.lane.b32.xlu0 %v1268, 16
      %v1275 = vpop.permute.xlu0 %1274
      %v1276 = vsel %vm439, %v1273, %v1275
      %v1279 = vsel %vm439, 0.0, %v1273
      %1280 = vst [vmem:[#allocation2 + $0x10] sm:$0xff] %v1279
      %1281 = vst [vmem:[#allocation2 + $0x18] sm:$0xff] %v1276
      %1282 = vst [vmem:[#allocation2 + $0x20] sm:$0xff] %v1266
      %1283 = vst [vmem:[#allocation2 + $0x28] sm:$0xff] %v1268
      %1284 = vrot.lane.b32.xlu0 %v1266, 112
      %v1285 = vpop.permute.xlu0 %1284
      %1286 = vrot.lane.b32.xlu0 %v1268, 112
      %v1287 = vpop.permute.xlu0 %1286
      %v1288 = vsel %vm452, %v1285, %v1287
      %v1291 = vsel %vm452, %v1287, 0.0
      %1292 = vst [vmem:[#allocation2 + $0x30] sm:$0xff] %v1288
      %1293 = vst [vmem:[#allocation2 + $0x38] sm:$0xff] %v1291
      %s1294 = scalar_lea.vmem %s1, 56
      %v1295 = vld [vmem:[%s1294] sm:$0xff]
      %v1296 = vld [vmem:[#allocation2] sm:$0xff]
      %v1297 = vld [vmem:[#allocation2 + $0x8] sm:$0xff]
      %v1298 = vld [vmem:[#allocation2 + $0x10] sm:$0xff]
      %v1299 = vld [vmem:[#allocation2 + $0x18] sm:$0xff]
      %v1300 = vld [vmem:[#allocation2 + $0x20] sm:$0xff]
      %v1301 = vld [vmem:[#allocation2 + $0x28] sm:$0xff]
      %v1302 = vld [vmem:[#allocation2 + $0x30] sm:$0xff]
      %v1303 = vld [vmem:[#allocation2 + $0x38] sm:$0xff]
      %v1304 = vld [vmem:[#allocation2 + $0x40] sm:$0xff]
      %v1305 = vld [vmem:[#allocation2 + $0x48] sm:$0xff]
      %v1306 = vld [vmem:[#allocation2 + $0x50] sm:$0xff]
      %v1307 = vld [vmem:[#allocation2 + $0x58] sm:$0xff]
      %v1308 = vld [vmem:[#allocation2 + $0x60] sm:$0xff]
      %v1309 = vld [vmem:[#allocation2 + $0x68] sm:$0xff]
      %v1310 = vld [vmem:[#allocation2 + $0x70] sm:$0xff]
      %v1311 = vld [vmem:[#allocation2 + $0x78] sm:$0xff]
      %v1312 = vld [vmem:[#allocation2 + $0x80] sm:$0xff]
      %v1313 = vld [vmem:[#allocation2 + $0x88] sm:$0xff]
      %v1314 = vld [vmem:[#allocation2 + $0x90] sm:$0xff]
      %v1315 = vld [vmem:[#allocation2 + $0x98] sm:$0xff]
      %v1317 = vsel %vm325, %v1295, 0
      %1319 = vmatprep.subr.mxu0 %v1297
      %1320 = vmatpush1.msra.mxu0 %v1296
      %1321 = vmatprep.subr.mxu0 %v1299
      %1322 = vmatpush1.msra.mxu0 %v1298
      %1323 = vmatprep.subr.mxu0 %v1301
      %1324 = vmatpush1.msra.mxu0 %v1300
      %1325 = vmatprep.subr.mxu0 %v1303
      %1326 = vmatpush1.msra.mxu0 %v1302
      %1327 = vmatprep.subr.mxu0 %v1305
      %1328 = vmatpush1.msra.mxu0 %v1304
      %1329 = vmatprep.subr.mxu0 %v1307
      %1330 = vmatpush1.msra.mxu0 %v1306
      %1331 = vmatprep.subr.mxu0 %v1309
      %1332 = vmatpush1.msra.mxu0 %v1308
      %1333 = vmatprep.subr.mxu0 %v1311
      %1334 = vmatpush1.msra.mxu0 %v1310
      %1335 = vmatprep.subr.mxu0 %v1313
      %1336 = vmatpush1.msra.mxu0 %v1312
      %1337 = vmatprep.subr.mxu0 %v1315
      %1338 = vmatpush1.msra.mxu0 %v1314
      %1339 = vmatprep.subr.mxu0 0.0
      %1340 = vmatpush1.msra.mxu0 0.0
      %1341 = vmatprep.subr.mxu0 0.0
      %1342 = vmatpush1.msra.mxu0 0.0
      %1343 = vmatprep.subr.mxu0 0.0
      %1344 = vmatpush1.msra.mxu0 0.0
      %1345 = vmatprep.subr.mxu0 0.0
      %1346 = vmatpush1.msra.mxu0 0.0
      %1347 = vmatprep.subr.mxu0 0.0
      %1348 = vmatpush1.msra.mxu0 0.0
      %1349 = vmatprep.subr.mxu0 0.0
      %1350 = vmatpush1.msra.mxu0 0.0
      %1351 = vmatprep.subr.mxu0 0.0
      %1352 = vmatpush1.msra.mxu0 0.0
      %1353 = vmatprep.subr.mxu0 0.0
      %1354 = vmatpush1.msra.mxu0 0.0
      %1355 = vmatprep.subr.mxu0 0.0
      %1356 = vmatpush1.msra.mxu0 0.0
      %1357 = vmatprep.subr.mxu0 0.0
      %1358 = vmatpush1.msra.mxu0 0.0
      %1359 = vmatprep.subr.mxu0 0.0
      %1360 = vmatpush1.msra.mxu0 0.0
      %1361 = vmatprep.subr.mxu0 0.0
      %1362 = vmatpush1.msra.mxu0 0.0
      %1363 = vmatprep.subr.mxu0 0.0
      %1364 = vmatpush1.msra.mxu0 0.0
      %1365 = vmatprep.subr.mxu0 0.0
      %1366 = vmatpush1.msra.mxu0 0.0
      %1367 = vmatprep.subr.mxu0 0.0
      %1368 = vmatpush1.msra.mxu0 0.0
      %1369 = vmatprep.subr.mxu0 0.0
      %1370 = vmatpush1.msra.mxu0 0.0
      %1371 = vmatprep.subr.mxu0 0.0
      %1372 = vmatpush1.msra.mxu0 0.0
      %1373 = vmatprep.subr.mxu0 0.0
      %1374 = vmatpush1.msra.mxu0 0.0
      %1375 = vmatprep.subr.mxu0 0.0
      %1376 = vmatpush1.msra.mxu0 0.0
      %1377 = vmatprep.subr.mxu0 0.0
      %1378 = vmatpush1.msra.mxu0 0.0
      %1379 = vmatprep.subr.mxu0 0.0
      %1380 = vmatpush1.msra.mxu0 0.0
      %1381 = vmatprep.subr.mxu0 0.0
      %1382 = vmatpush1.msra.mxu0 0.0
      %1383 = vmatprep.mubr.f32.mxu0 0.0
      %1384 = vmatmul.mubr.f32.gmra.mrb[0].mxu0 %v1317
      %v1385 = vpop.f32.mrb[0].mxu0
      %v1386 = vadd.f32 0.0, %v1385
      %v1387 = vpop.f32.mrb[0].mxu0
      %v1388 = vadd.f32 0.0, %v1387
      %1389 = vdwg.mxu0
      %v1390 = vmax.f32 %v1386, 0.0
      %v1391 = vmax.f32 %v1388, 0.0
      %1392 = vst [vmem:[%s143] sm:$0xff] %v1390
      %1393 = vst [vmem:[%s143 + $0x8] sm:$0xff] %v1391
      %p1394 = scmp.lt.s32.totalorder %s13, 1
      %s1395 = scalar_select %p1394, %s13, 1
      %s1396 = smul.addr %s1395, 2
      %s1397 = smul.addr %s1396, 8
      %s1398 = scalar_lea.vmem %s2, %s1397
      // Predicated region
      $region29: #{msmsf_block.1} parent=27 // pred_check
        %p1399 = pneg %p78
      $region30: #{msmsf_block.1} parent=27 // pred_check_branch
        %1401 = sbr.rel (%p1399) target = $region32
      $region31: #{msmsf_block.1} parent=27 // pred_region
        _
      $region32: #{msmsf_block.1} parent=27 // pred_fallthru
        _
    $region28: #{msmsf_block.1} parent=5 // pred_fallthru
      _
    %p1402 = scmp.le.s32.totalorder 2, %s8
    // Predicated region
    $region33: #{msmsf_block.1} parent=5 // pred_check
      %p1403 = pneg %p1402
    $region34: #{msmsf_block.1} parent=5 // pred_check_branch
      %1405 = sbr.rel (%p1403) target = $region36
    $region35: #{msmsf_block.1} parent=5 // pred_region
      %s1406 = ssub.s32 %s8, 2
      // Predicated region
      $region37: #{msmsf_block.1} parent=35 // pred_check
        %p1407 = pneg %p84
      $region38: #{msmsf_block.1} parent=35 // pred_check_branch
        %1409 = sbr.rel (%p1407) target = $region40
      $region39: #{msmsf_block.1} parent=35 // pred_region
        %p1410 = scmp.lt.s32.totalorder %s14, 1
        %s1411 = scalar_select %p1410, %s14, 1
        %s1412 = smul.addr %s1411, 2
        %s1413 = smul.addr %s1412, 8
        %s1414 = scalar_lea.vmem %s2, %s1413
      $region40: #{msmsf_block.1} parent=35 // pred_fallthru
        _
    $region36: #{msmsf_block.1} parent=5 // pred_fallthru
      _
  $region6: #{msmsf_block.1} parent=0 // loop_footer
    %s12 = sadd.s32 1, %s8
  $region7: #{msmsf_block.1} parent=0 // loop_footer_branch
    %7 = sbr.rel target = $region3
  $region8: #{msmsf_block.1} parent=0 // loop_exit
    _

</llo_original>
